<compile_context>
chip_gen: v6e
topology: v6e:2x2x1
jax: 0.10.0
libtpu: 0.0.40
codegen_flags: <defaults>
</compile_context>

<pallas_src>
import functools

import numpy as np
import jax
import jax.numpy as jnp
from jax.experimental import pallas as pl
from jax.experimental.pallas import tpu as pltpu

# ----------------------------- configuration (scaled-down, synthetic) --------
BS = 2                          # cfg.TRAIN.BATCH_SIZE
NF = 4                          # cfg.DATA.NUM_FRAMES
M = BS * NF                     # frames flattened into batch
C_IN = 3                        # RGB
H_IN = W_IN = 16
HF = WF = H_IN // 2             # backbone 2x2 avg-pool output spatial
H_OUT = W_OUT = 2 * HF          # after UpsamplingNearest2d(scale_factor=2)
C_FEAT = 64                     # stands in for the 2048 backbone channels (scaled down)
HW_IN = H_IN * W_IN             # 256
HW_POOL = HF * WF               # 64
HW_OUT = H_OUT * W_OUT          # 256
ENABLE_DETECTION = False        # cfg.DETECTION.ENABLE
# TODO(synk): TSMRoIHead / RoIAlign detection branch not implemented (enable_detection=False).


# ----------------------------- Pallas kernel ---------------------------------
def recognizer_kernel(x_ref, poolT_ref, wbig_ref, b_ref, upT_ref, o_ref):
    # x_ref    : (M*C_IN, HW_IN)    = (24, 256)   frames/channels in rows, pixels in lanes
    # poolT_ref: (HW_IN, HW_POOL)   = (256, 64)   2x2 average-pool selection
    # wbig_ref : (M*C_FEAT, M*C_IN) = (512, 24)   block-diag 1x1-conv weight (kron(I_M, W^T))
    # b_ref    : (M*C_FEAT, 1)      = (512, 1)    per-row bias column (lane broadcast)
    # upT_ref  : (HW_POOL, HW_OUT)  = (64, 256)   nearest-neighbour 2x upsample selection
    # o_ref    : (BS, C_FEAT, NF*HW_OUT) = (2, 64, 1024)  already-permuted, lane-dense output

    # 2x2 average pool, batched over all frames*channels (one MXU push).
    pooled = jnp.dot(x_ref[...], poolT_ref[...],
                     preferred_element_type=jnp.float32)               # (24, 64)
    # 1x1 conv (3 -> C_FEAT) as one block-diagonal matmul; rows ordered (frame, feat_ch).
    feat = jnp.dot(wbig_ref[...], pooled,
                   preferred_element_type=jnp.float32) + b_ref[...]    # (512, 64)
    feat = jnp.maximum(feat, 0.0)                                       # ReLU
    # Nearest-neighbour 2x upsample, batched over all frames*feature-channels.
    up = jnp.dot(feat, upT_ref[...],
                 preferred_element_type=jnp.float32)                    # (512, 256)
    # Fused permute(0,2,1,3,4): write each frame's contiguous (C_FEAT, HW_OUT) slab
    # at its static 128-aligned lane offset f*HW_OUT inside the per-sample row.
    for b in range(BS):
        for f in range(NF):
            r0 = (b * NF + f) * C_FEAT
            o_ref[b, :, f * HW_OUT:(f + 1) * HW_OUT] = up[r0:r0 + C_FEAT, :]


def _pallas_extract_and_upsample(x2d, poolT, w_big, b_rows, upT):
    """x2d: (M*C_IN, HW_IN) -> (BS, C_FEAT, NF*HW_OUT), permuted layout."""
    flops = 2 * (M * C_IN * HW_IN * HW_POOL          # pool matmul
                 + (M * C_FEAT) * (M * C_IN) * HW_POOL   # block-diag 1x1 conv
                 + (M * C_FEAT) * HW_POOL * HW_OUT)      # upsample matmul
    bytes_accessed = 4 * (x2d.size + poolT.size + w_big.size + b_rows.size
                          + upT.size + BS * C_FEAT * NF * HW_OUT)
    return pl.pallas_call(
        recognizer_kernel,
        out_shape=jax.ShapeDtypeStruct((BS, C_FEAT, NF * HW_OUT), jnp.float32),
        grid=(1,),   # single step: whole working set (<1 MiB) fits VMEM on all gens
        in_specs=[
            pl.BlockSpec((M * C_IN, HW_IN), lambda i: (0, 0)),
            pl.BlockSpec((HW_IN, HW_POOL), lambda i: (0, 0)),
            pl.BlockSpec((M * C_FEAT, M * C_IN), lambda i: (0, 0)),
            pl.BlockSpec((M * C_FEAT, 1), lambda i: (0, 0)),
            pl.BlockSpec((HW_POOL, HW_OUT), lambda i: (0, 0)),
        ],
        out_specs=pl.BlockSpec((BS, C_FEAT, NF * HW_OUT), lambda i: (0, 0, 0)),
        compiler_params=pltpu.CompilerParams(
            dimension_semantics=("arbitrary",)),
        cost_estimate=pl.CostEstimate(flops=flops, transcendentals=0,
                                      bytes_accessed=bytes_accessed),
    )(x2d, poolT, w_big, b_rows, upT)


# ----------------------------- shared constants (built once) ------------------
@functools.cache
def get_selection_matrices():
    poolT = np.zeros((HW_IN, HW_POOL), np.float32)
    for h in range(H_IN):
        for w in range(W_IN):
            poolT[h * W_IN + w, (h // 2) * WF + (w // 2)] = 0.25
    upT = np.zeros((HW_POOL, HW_OUT), np.float32)
    for h in range(H_OUT):
        for w in range(W_OUT):
            upT[(h // 2) * WF + (w // 2), h * W_OUT + w] = 1.0
    return jnp.asarray(poolT), jnp.asarray(upT)


# ----------------------------- wrapper (forward) ------------------------------
def base_recognizer_forward(inp, w_conv, b_conv, bboxes=None):
    """inp: list whose first element is (bs, nf, 3, H_IN, W_IN) float32 (NCHW per frame)."""
    x = inp[0]
    bs, nf = x.shape[0], x.shape[1]
    # input1 = input1.reshape((-1, 3) + input1.shape[3:])  -- plus flatten spatial.
    # Pure zero-copy reshape to a lane-dense 2D block: rows = (frame, channel), lanes = pixels.
    x2d = x.reshape(bs * nf * C_IN, HW_IN)                           # (24, 256)

    poolT, upT = get_selection_matrices()
    # Block-diagonal 1x1-conv weight: row (m*C_FEAT + f), col (m*C_IN + c) -> w_conv[c, f].
    w_big = jnp.kron(jnp.eye(bs * nf, dtype=w_conv.dtype), w_conv.T)  # (512, 24), tiny
    # Bias per output row (repeats every C_FEAT rows), as a column for lane broadcast.
    b_rows = jnp.tile(b_conv.reshape(1, C_FEAT), (bs * nf, 1)).reshape(bs * nf * C_FEAT, 1)

    # Kernel output is already in the permuted (bs, C_FEAT, nf*HW_OUT) layout.
    out = _pallas_extract_and_upsample(x2d, poolT, w_big, b_rows, upT)

    # view(-1, nf, C, 16, 16) + permute(0, 2, 1, 3, 4) == pure reshape in this layout.
    x_out = out.reshape(bs, C_FEAT, nf, H_OUT, W_OUT)

    if ENABLE_DETECTION:
        # TODO(synk): head_helper.TSMRoIHead(x, bboxes) (RoIAlign) has no clean
        # Pallas equivalent here; detection path disabled.
        pass
    return x_out


# ----------------------------- pure-JAX reference -----------------------------
def reference_forward(inp, w_conv, b_conv):
    x = inp[0]
    bs, nf = x.shape[0], x.shape[1]
    x = x.reshape((-1, C_IN) + x.shape[3:])                          # (M,3,H,W)
    m = x.shape[0]
    pooled = x.reshape(m, C_IN, HF, 2, WF, 2).mean(axis=(3, 5))      # 2x2 avg pool
    feat = jnp.einsum('mkhw,kc->mchw', pooled, w_conv) + b_conv.reshape(1, C_FEAT, 1, 1)
    feat = jnp.maximum(feat, 0.0)
    up = jnp.repeat(jnp.repeat(feat, 2, axis=2), 2, axis=3)          # nearest 2x
    out = up.reshape(bs, nf, C_FEAT, H_OUT, W_OUT)
    return jnp.transpose(out, (0, 2, 1, 3, 4))


# ----------------------------- main -------------------------------------------
if __name__ == "__main__":
    key = jax.random.PRNGKey(0)
    k_x, k_w, k_b = jax.random.split(key, 3)

    # input[0]: (bs, nf, 3, H, W)
    x_in = jax.random.normal(k_x, (BS, NF, C_IN, H_IN, W_IN), dtype=jnp.float32)
    # deterministic synthetic backbone parameters (1x1 conv 3 -> C_FEAT)
    w_conv = jax.random.normal(k_w, (C_IN, C_FEAT), dtype=jnp.float32) * 0.1
    b_conv = jax.random.normal(k_b, (C_FEAT,), dtype=jnp.float32) * 0.01

    out = base_recognizer_forward([x_in], w_conv, b_conv)
    out = jax.block_until_ready(out)

    ref = jax.block_until_ready(reference_forward([x_in], w_conv, b_conv))
    assert out.shape == (BS, C_FEAT, NF, H_OUT, W_OUT), out.shape
    np.testing.assert_allclose(np.asarray(out), np.asarray(ref), rtol=1e-4, atol=1e-4)

    print("KERNEL_OK")
</pallas_src>

<mosaic_0001>
module attributes {stable_mosaic.version = 11 : i64} {
  func.func @recognizer_kernel(%arg0: i32, %arg1: memref<24x256xf32, #tpu.memory_space<vmem>>, %arg2: memref<256x64xf32, #tpu.memory_space<vmem>>, %arg3: memref<512x24xf32, #tpu.memory_space<vmem>>, %arg4: memref<512x1xf32, #tpu.memory_space<vmem>>, %arg5: memref<64x256xf32, #tpu.memory_space<vmem>>, %arg6: memref<2x64x1024xf32, #tpu.memory_space<vmem>>) attributes {dimension_semantics = [#tpu.dimension_semantics<arbitrary>], iteration_bounds = array<i64: 1>, scalar_prefetch = 0 : i64, scratch_operands = 0 : i64, tpu.core_type = #tpu.core_type<tc>, window_params = [{pipeline_mode = #tpu.pipeline_mode<synchronous>, transform_indices = @transform_0, window_bounds = array<i64: 24, 256>}, {pipeline_mode = #tpu.pipeline_mode<synchronous>, transform_indices = @transform_1, window_bounds = array<i64: 256, 64>}, {pipeline_mode = #tpu.pipeline_mode<synchronous>, transform_indices = @transform_2, window_bounds = array<i64: 512, 24>}, {pipeline_mode = #tpu.pipeline_mode<synchronous>, transform_indices = @transform_3, window_bounds = array<i64: 512, 1>}, {pipeline_mode = #tpu.pipeline_mode<synchronous>, transform_indices = @transform_4, window_bounds = array<i64: 64, 256>}, {pipeline_mode = #tpu.pipeline_mode<synchronous>, transform_indices = @transform_5, window_bounds = array<i64: 2, 64, 1024>}]} {
    %c0 = arith.constant 0 : index
    %c0_0 = arith.constant 0 : index
    %0 = vector.load %arg1[%c0, %c0_0] : memref<24x256xf32, #tpu.memory_space<vmem>>, vector<24x256xf32>
    %c0_1 = arith.constant 0 : index
    %c0_2 = arith.constant 0 : index
    %1 = vector.load %arg2[%c0_1, %c0_2] : memref<256x64xf32, #tpu.memory_space<vmem>>, vector<256x64xf32>
    %cst = arith.constant dense<0.000000e+00> : vector<24x64xf32>
    %2 = tpu.matmul %0, %1, %cst {dimension_numbers = #tpu.dot_dimension_numbers<[1], [0], [0], [1], [0, 0, 1, 1], [], []>} : vector<24x256xf32>, vector<256x64xf32>, vector<24x64xf32> -> vector<24x64xf32>
    %c0_3 = arith.constant 0 : index
    %c0_4 = arith.constant 0 : index
    %3 = vector.load %arg3[%c0_3, %c0_4] : memref<512x24xf32, #tpu.memory_space<vmem>>, vector<512x24xf32>
    %cst_5 = arith.constant dense<0.000000e+00> : vector<512x64xf32>
    %4 = tpu.matmul %3, %2, %cst_5 {dimension_numbers = #tpu.dot_dimension_numbers<[1], [0], [0], [1], [0, 0, 1, 1], [], []>} : vector<512x24xf32>, vector<24x64xf32>, vector<512x64xf32> -> vector<512x64xf32>
    %c0_6 = arith.constant 0 : index
    %c0_7 = arith.constant 0 : index
    %5 = vector.load %arg4[%c0_6, %c0_7] : memref<512x1xf32, #tpu.memory_space<vmem>>, vector<512x1xf32>
    %6 = vector.broadcast %5 : vector<512x1xf32> to vector<512x64xf32>
    %7 = arith.addf %4, %6 : vector<512x64xf32>
    %cst_8 = arith.constant 0.000000e+00 : f32
    %8 = vector.broadcast %cst_8 : f32 to vector<512x64xf32>
    %9 = arith.maximumf %7, %8 : vector<512x64xf32>
    %c0_9 = arith.constant 0 : index
    %c0_10 = arith.constant 0 : index
    %10 = vector.load %arg5[%c0_9, %c0_10] : memref<64x256xf32, #tpu.memory_space<vmem>>, vector<64x256xf32>
    %cst_11 = arith.constant dense<0.000000e+00> : vector<512x256xf32>
    %11 = tpu.matmul %9, %10, %cst_11 {dimension_numbers = #tpu.dot_dimension_numbers<[1], [0], [0], [1], [0, 0, 1, 1], [], []>} : vector<512x64xf32>, vector<64x256xf32>, vector<512x256xf32> -> vector<512x256xf32>
    %12 = vector.extract_strided_slice %11 {offsets = [0, 0], sizes = [64, 256], strides = [1, 1]} : vector<512x256xf32> to vector<64x256xf32>
    %c0_12 = arith.constant 0 : index
    %c0_13 = arith.constant 0 : index
    %c0_14 = arith.constant 0 : index
    %13 = vector.load %arg6[%c0_12, %c0_13, %c0_14] : memref<2x64x1024xf32, #tpu.memory_space<vmem>>, vector<1x64x256xf32>
    %14 = vector.shape_cast %13 : vector<1x64x256xf32> to vector<64x256xf32>
    %15 = vector.shape_cast %12 : vector<64x256xf32> to vector<1x64x256xf32>
    tpu.vector_store %arg6[%c0_12, %c0_13, %c0_14], %15 {strides = array<i32>} : memref<2x64x1024xf32, #tpu.memory_space<vmem>>, vector<1x64x256xf32>,
    %16 = vector.extract_strided_slice %11 {offsets = [64, 0], sizes = [64, 256], strides = [1, 1]} : vector<512x256xf32> to vector<64x256xf32>
    %c0_15 = arith.constant 0 : index
    %c0_16 = arith.constant 0 : index
    %c256 = arith.constant 256 : index
    %17 = vector.load %arg6[%c0_15, %c0_16, %c256] : memref<2x64x1024xf32, #tpu.memory_space<vmem>>, vector<1x64x256xf32>
    %18 = vector.shape_cast %17 : vector<1x64x256xf32> to vector<64x256xf32>
    %19 = vector.shape_cast %16 : vector<64x256xf32> to vector<1x64x256xf32>
    tpu.vector_store %arg6[%c0_15, %c0_16, %c256], %19 {strides = array<i32>} : memref<2x64x1024xf32, #tpu.memory_space<vmem>>, vector<1x64x256xf32>,
    %20 = vector.extract_strided_slice %11 {offsets = [128, 0], sizes = [64, 256], strides = [1, 1]} : vector<512x256xf32> to vector<64x256xf32>
    %c0_17 = arith.constant 0 : index
    %c0_18 = arith.constant 0 : index
    %c512 = arith.constant 512 : index
    %21 = vector.load %arg6[%c0_17, %c0_18, %c512] : memref<2x64x1024xf32, #tpu.memory_space<vmem>>, vector<1x64x256xf32>
    %22 = vector.shape_cast %21 : vector<1x64x256xf32> to vector<64x256xf32>
    %23 = vector.shape_cast %20 : vector<64x256xf32> to vector<1x64x256xf32>
    tpu.vector_store %arg6[%c0_17, %c0_18, %c512], %23 {strides = array<i32>} : memref<2x64x1024xf32, #tpu.memory_space<vmem>>, vector<1x64x256xf32>,
    %24 = vector.extract_strided_slice %11 {offsets = [192, 0], sizes = [64, 256], strides = [1, 1]} : vector<512x256xf32> to vector<64x256xf32>
    %c0_19 = arith.constant 0 : index
    %c0_20 = arith.constant 0 : index
    %c768 = arith.constant 768 : index
    %25 = vector.load %arg6[%c0_19, %c0_20, %c768] : memref<2x64x1024xf32, #tpu.memory_space<vmem>>, vector<1x64x256xf32>
    %26 = vector.shape_cast %25 : vector<1x64x256xf32> to vector<64x256xf32>
    %27 = vector.shape_cast %24 : vector<64x256xf32> to vector<1x64x256xf32>
    tpu.vector_store %arg6[%c0_19, %c0_20, %c768], %27 {strides = array<i32>} : memref<2x64x1024xf32, #tpu.memory_space<vmem>>, vector<1x64x256xf32>,
    %28 = vector.extract_strided_slice %11 {offsets = [256, 0], sizes = [64, 256], strides = [1, 1]} : vector<512x256xf32> to vector<64x256xf32>
    %c1 = arith.constant 1 : index
    %c0_21 = arith.constant 0 : index
    %c0_22 = arith.constant 0 : index
    %29 = vector.load %arg6[%c1, %c0_21, %c0_22] : memref<2x64x1024xf32, #tpu.memory_space<vmem>>, vector<1x64x256xf32>
    %30 = vector.shape_cast %29 : vector<1x64x256xf32> to vector<64x256xf32>
    %31 = vector.shape_cast %28 : vector<64x256xf32> to vector<1x64x256xf32>
    tpu.vector_store %arg6[%c1, %c0_21, %c0_22], %31 {strides = array<i32>} : memref<2x64x1024xf32, #tpu.memory_space<vmem>>, vector<1x64x256xf32>,
    %32 = vector.extract_strided_slice %11 {offsets = [320, 0], sizes = [64, 256], strides = [1, 1]} : vector<512x256xf32> to vector<64x256xf32>
    %c1_23 = arith.constant 1 : index
    %c0_24 = arith.constant 0 : index
    %c256_25 = arith.constant 256 : index
    %33 = vector.load %arg6[%c1_23, %c0_24, %c256_25] : memref<2x64x1024xf32, #tpu.memory_space<vmem>>, vector<1x64x256xf32>
    %34 = vector.shape_cast %33 : vector<1x64x256xf32> to vector<64x256xf32>
    %35 = vector.shape_cast %32 : vector<64x256xf32> to vector<1x64x256xf32>
    tpu.vector_store %arg6[%c1_23, %c0_24, %c256_25], %35 {strides = array<i32>} : memref<2x64x1024xf32, #tpu.memory_space<vmem>>, vector<1x64x256xf32>,
    %36 = vector.extract_strided_slice %11 {offsets = [384, 0], sizes = [64, 256], strides = [1, 1]} : vector<512x256xf32> to vector<64x256xf32>
    %c1_26 = arith.constant 1 : index
    %c0_27 = arith.constant 0 : index
    %c512_28 = arith.constant 512 : index
    %37 = vector.load %arg6[%c1_26, %c0_27, %c512_28] : memref<2x64x1024xf32, #tpu.memory_space<vmem>>, vector<1x64x256xf32>
    %38 = vector.shape_cast %37 : vector<1x64x256xf32> to vector<64x256xf32>
    %39 = vector.shape_cast %36 : vector<64x256xf32> to vector<1x64x256xf32>
    tpu.vector_store %arg6[%c1_26, %c0_27, %c512_28], %39 {strides = array<i32>} : memref<2x64x1024xf32, #tpu.memory_space<vmem>>, vector<1x64x256xf32>,
    %40 = vector.extract_strided_slice %11 {offsets = [448, 0], sizes = [64, 256], strides = [1, 1]} : vector<512x256xf32> to vector<64x256xf32>
    %c1_29 = arith.constant 1 : index
    %c0_30 = arith.constant 0 : index
    %c768_31 = arith.constant 768 : index
    %41 = vector.load %arg6[%c1_29, %c0_30, %c768_31] : memref<2x64x1024xf32, #tpu.memory_space<vmem>>, vector<1x64x256xf32>
    %42 = vector.shape_cast %41 : vector<1x64x256xf32> to vector<64x256xf32>
    %43 = vector.shape_cast %40 : vector<64x256xf32> to vector<1x64x256xf32>
    tpu.vector_store %arg6[%c1_29, %c0_30, %c768_31], %43 {strides = array<i32>} : memref<2x64x1024xf32, #tpu.memory_space<vmem>>, vector<1x64x256xf32>,
    return
  }
  func.func @transform_0(%arg0: i32) -> (i32, i32) {
    %c0_i32 = arith.constant 0 : i32
    %c0_i32_0 = arith.constant 0 : i32
    %c0_i32_1 = arith.constant 0 : i32
    return %c0_i32, %c0_i32_0 : i32, i32
  }
  func.func @transform_1(%arg0: i32) -> (i32, i32) {
    %c0_i32 = arith.constant 0 : i32
    %c0_i32_0 = arith.constant 0 : i32
    %c0_i32_1 = arith.constant 0 : i32
    return %c0_i32, %c0_i32_0 : i32, i32
  }
  func.func @transform_2(%arg0: i32) -> (i32, i32) {
    %c0_i32 = arith.constant 0 : i32
    %c0_i32_0 = arith.constant 0 : i32
    %c0_i32_1 = arith.constant 0 : i32
    return %c0_i32, %c0_i32_0 : i32, i32
  }
  func.func @transform_3(%arg0: i32) -> (i32, i32) {
    %c0_i32 = arith.constant 0 : i32
    %c0_i32_0 = arith.constant 0 : i32
    %c0_i32_1 = arith.constant 0 : i32
    return %c0_i32, %c0_i32_0 : i32, i32
  }
  func.func @transform_4(%arg0: i32) -> (i32, i32) {
    %c0_i32 = arith.constant 0 : i32
    %c0_i32_0 = arith.constant 0 : i32
    %c0_i32_1 = arith.constant 0 : i32
    return %c0_i32, %c0_i32_0 : i32, i32
  }
  func.func @transform_5(%arg0: i32) -> (i32, i32, i32) {
    %c0_i32 = arith.constant 0 : i32
    %c0_i32_0 = arith.constant 0 : i32
    %c0_i32_1 = arith.constant 0 : i32
    %c0_i32_2 = arith.constant 0 : i32
    return %c0_i32, %c0_i32_0, %c0_i32_1 : i32, i32, i32
  }
}

</mosaic_0001>

<llo_original>
// kernel: tpu_custom_call.1
$region0: #{tpu_custom_call.1}
  #allocation0 [shape = 'u32[]', space=smem, size = 0x4, offset = 0x4, fixed_abs, tag = 'smem constant byte address 0x4 - core index']
  #allocation1 [shape = 'u32[144,128]{1,0:T(1,128)}', space=vmem, size = 0x12000, scoped, tag = 'internal scratch']
  %s0 = inlined_call_operand.vmem [shape: f32[24,256], index: 0, kind: input, shape index: {}]
  %s1 = inlined_call_operand.vmem [shape: f32[256,64], index: 1, kind: input, shape index: {}]
  %s2 = inlined_call_operand.vmem [shape: f32[512,24], index: 2, kind: input, shape index: {}]
  %s3 = inlined_call_operand.vmem [shape: f32[512,1], index: 3, kind: input, shape index: {}]
  %s4 = inlined_call_operand.vmem [shape: f32[64,256], index: 4, kind: input, shape index: {}]
  %s5 = inlined_call_operand.hbm [shape: f32[2,64,1024], index: 5, kind: output, shape index: {}]
  %s6 = sld [smem:[#allocation0]]
  $region30: #{tpu_custom_call.1} parent=0
    _
  %s8 = ssub.s32 1, %s6
  %s9 = scalar_select 0, %s8, %s6
  $region1: #{tpu_custom_call.1} parent=0
    #allocation2 [shape = 'u8[524288]{0}', space=vmem, size = 0x80000, scoped, tag = 'output window, operand 0, single buffered']
    #allocation3 [shape = 's32[1]{0}', space=sflag, size = 0x4, scoped, tag = 'scoped memory for tpu_custom_call.1']
    %10 = vsyncpa [#allocation3], 0
    // Predicated region
    $region2: #{tpu_custom_call.1} parent=1 // pred_check
      _
    $region3: #{tpu_custom_call.1} parent=1 // pred_check_branch
      %12 = sbr.rel (0) target = $region5
    $region4: #{tpu_custom_call.1} parent=1 // pred_region
      _
    $region5: #{tpu_custom_call.1} parent=1 // pred_fallthru
      _
    // Predicated region
    $region6: #{tpu_custom_call.1} parent=1 // pred_check
      _
    $region7: #{tpu_custom_call.1} parent=1 // pred_check_branch
      %14 = sbr.rel (0) target = $region9
    $region8: #{tpu_custom_call.1} parent=1 // pred_region
      _
    $region9: #{tpu_custom_call.1} parent=1 // pred_fallthru
      _
    // Predicated region
    $region10: #{tpu_custom_call.1} parent=1 // pred_check
      _
    $region11: #{tpu_custom_call.1} parent=1 // pred_check_branch
      %16 = sbr.rel (0) target = $region13
    $region12: #{tpu_custom_call.1} parent=1 // pred_region
      _
    $region13: #{tpu_custom_call.1} parent=1 // pred_fallthru
      _
    // Predicated region
    $region14: #{tpu_custom_call.1} parent=1 // pred_check
      _
    $region15: #{tpu_custom_call.1} parent=1 // pred_check_branch
      %18 = sbr.rel (0) target = $region17
    $region16: #{tpu_custom_call.1} parent=1 // pred_region
      _
    $region17: #{tpu_custom_call.1} parent=1 // pred_fallthru
      _
    // Predicated region
    $region18: #{tpu_custom_call.1} parent=1 // pred_check
      _
    $region19: #{tpu_custom_call.1} parent=1 // pred_check_branch
      %20 = sbr.rel (0) target = $region21
    $region20: #{tpu_custom_call.1} parent=1 // pred_region
      _
    $region21: #{tpu_custom_call.1} parent=1 // pred_fallthru
      _
    %v21 = vld [vmem:[%s0] sm:$0xff]
    %v22 = vld [vmem:[%s0 + $0x8] sm:$0xff]
    %v23 = vld [vmem:[%s0 + $0x10] sm:$0xff]
    %v24 = vld [vmem:[%s0 + $0x18] sm:$0xff]
    %v25 = vld [vmem:[%s0 + $0x20] sm:$0xff]
    %v26 = vld [vmem:[%s0 + $0x28] sm:$0xff]
    %v27 = vld [vmem:[%s1] sm:$0xff]
    %v28 = vld [vmem:[%s1 + $0x8] sm:$0xff]
    %v29 = vld [vmem:[%s1 + $0x10] sm:$0xff]
    %v30 = vld [vmem:[%s1 + $0x18] sm:$0xff]
    %v31 = vld [vmem:[%s1 + $0x20] sm:$0xff]
    %v32 = vld [vmem:[%s1 + $0x28] sm:$0xff]
    %v33 = vld [vmem:[%s1 + $0x30] sm:$0xff]
    %v34 = vld [vmem:[%s1 + $0x38] sm:$0xff]
    %v35 = vld [vmem:[%s1 + $0x40] sm:$0xff]
    %v36 = vld [vmem:[%s1 + $0x48] sm:$0xff]
    %v37 = vld [vmem:[%s1 + $0x50] sm:$0xff]
    %v38 = vld [vmem:[%s1 + $0x58] sm:$0xff]
    %v39 = vld [vmem:[%s1 + $0x60] sm:$0xff]
    %v40 = vld [vmem:[%s1 + $0x68] sm:$0xff]
    %v41 = vld [vmem:[%s1 + $0x70] sm:$0xff]
    %v42 = vld [vmem:[%s1 + $0x78] sm:$0xff]
    %v43 = vld [vmem:[%s1 + $0x80] sm:$0xff]
    %v44 = vld [vmem:[%s1 + $0x88] sm:$0xff]
    %v45 = vld [vmem:[%s1 + $0x90] sm:$0xff]
    %v46 = vld [vmem:[%s1 + $0x98] sm:$0xff]
    %v47 = vld [vmem:[%s1 + $0xa0] sm:$0xff]
    %v48 = vld [vmem:[%s1 + $0xa8] sm:$0xff]
    %v49 = vld [vmem:[%s1 + $0xb0] sm:$0xff]
    %v50 = vld [vmem:[%s1 + $0xb8] sm:$0xff]
    %v51 = vld [vmem:[%s1 + $0xc0] sm:$0xff]
    %v52 = vld [vmem:[%s1 + $0xc8] sm:$0xff]
    %v53 = vld [vmem:[%s1 + $0xd0] sm:$0xff]
    %v54 = vld [vmem:[%s1 + $0xd8] sm:$0xff]
    %v55 = vld [vmem:[%s1 + $0xe0] sm:$0xff]
    %v56 = vld [vmem:[%s1 + $0xe8] sm:$0xff]
    %v57 = vld [vmem:[%s1 + $0xf0] sm:$0xff]
    %v58 = vld [vmem:[%s1 + $0xf8] sm:$0xff]
    %59 = vmatprep.subr.mxu0 0.0
    %60 = vmatpush1.msra.mxu0 %v42
    %61 = vmatprep.subr.mxu0 0.0
    %62 = vmatpush1.msra.mxu0 %v41
    %63 = vmatprep.subr.mxu0 0.0
    %64 = vmatpush1.msra.mxu0 %v40
    %65 = vmatprep.subr.mxu0 0.0
    %66 = vmatpush1.msra.mxu0 %v39
    %67 = vmatprep.subr.mxu0 0.0
    %68 = vmatpush1.msra.mxu0 %v38
    %69 = vmatprep.subr.mxu0 0.0
    %70 = vmatpush1.msra.mxu0 %v37
    %71 = vmatprep.subr.mxu0 0.0
    %72 = vmatpush1.msra.mxu0 %v36
    %73 = vmatprep.subr.mxu0 0.0
    %74 = vmatpush1.msra.mxu0 %v35
    %75 = vmatprep.subr.mxu0 0.0
    %76 = vmatpush1.msra.mxu0 %v34
    %77 = vmatprep.subr.mxu0 0.0
    %78 = vmatpush1.msra.mxu0 %v33
    %79 = vmatprep.subr.mxu0 0.0
    %80 = vmatpush1.msra.mxu0 %v32
    %81 = vmatprep.subr.mxu0 0.0
    %82 = vmatpush1.msra.mxu0 %v31
    %83 = vmatprep.subr.mxu0 0.0
    %84 = vmatpush1.msra.mxu0 %v30
    %85 = vmatprep.subr.mxu0 0.0
    %86 = vmatpush1.msra.mxu0 %v29
    %87 = vmatprep.subr.mxu0 0.0
    %88 = vmatpush1.msra.mxu0 %v28
    %89 = vmatprep.subr.mxu0 0.0
    %90 = vmatpush1.msra.mxu0 %v27
    %91 = vmatprep.subr.mxu0 0.0
    %92 = vmatpush2.msra.mxu0 %v58
    %93 = vmatprep.subr.mxu0 0.0
    %94 = vmatpush2.msra.mxu0 %v57
    %95 = vmatprep.subr.mxu0 0.0
    %96 = vmatpush2.msra.mxu0 %v56
    %97 = vmatprep.subr.mxu0 0.0
    %98 = vmatpush2.msra.mxu0 %v55
    %99 = vmatprep.subr.mxu0 0.0
    %100 = vmatpush2.msra.mxu0 %v54
    %101 = vmatprep.subr.mxu0 0.0
    %102 = vmatpush2.msra.mxu0 %v53
    %103 = vmatprep.subr.mxu0 0.0
    %104 = vmatpush2.msra.mxu0 %v52
    %105 = vmatprep.subr.mxu0 0.0
    %106 = vmatpush2.msra.mxu0 %v51
    %107 = vmatprep.subr.mxu0 0.0
    %108 = vmatpush2.msra.mxu0 %v50
    %109 = vmatprep.subr.mxu0 0.0
    %110 = vmatpush2.msra.mxu0 %v49
    %111 = vmatprep.subr.mxu0 0.0
    %112 = vmatpush2.msra.mxu0 %v48
    %113 = vmatprep.subr.mxu0 0.0
    %114 = vmatpush2.msra.mxu0 %v47
    %115 = vmatprep.subr.mxu0 0.0
    %116 = vmatpush2.msra.mxu0 %v46
    %117 = vmatprep.subr.mxu0 0.0
    %118 = vmatpush2.msra.mxu0 %v45
    %119 = vmatprep.subr.mxu0 0.0
    %120 = vmatpush2.msra.mxu0 %v44
    %121 = vmatprep.subr.mxu0 0.0
    %122 = vmatpush2.msra.mxu0 %v43
    %123 = vmatprep.mubr.f32.mxu0 %v22
    %124 = vmatmul.mubr.f32.gmra.mxu0 %v21
    %v125 = vpop.f32.mrf.mxu0
    %v126 = vadd.f32 0.0, %v125
    %v127 = vpop.f32.mrf.mxu0
    %128 = vmatprep.mubr.f32.mxu0 %v24
    %129 = vmatmul.mubr.f32.gmra.mxu0 %v23
    %v130 = vpop.f32.mrf.mxu0
    %v131 = vadd.f32 0.0, %v130
    %v132 = vpop.f32.mrf.mxu0
    %133 = vmatprep.mubr.f32.mxu0 %v26
    %134 = vmatmul.mubr.f32.gmra.mxu0 %v25
    %v135 = vpop.f32.mrf.mxu0
    %v136 = vadd.f32 0.0, %v135
    %v137 = vpop.f32.mrf.mxu0
    %138 = vdwg.mxu0
    %v139 = vld [vmem:[%s2] sm:$0xff]
    %v140 = vld [vmem:[%s2 + $0x8] sm:$0xff]
    %v141 = vld [vmem:[%s2 + $0x10] sm:$0xff]
    %v142 = vld [vmem:[%s2 + $0x18] sm:$0xff]
    %v143 = vld [vmem:[%s2 + $0x20] sm:$0xff]
    %v144 = vld [vmem:[%s2 + $0x28] sm:$0xff]
    %v145 = vld [vmem:[%s2 + $0x30] sm:$0xff]
    %v146 = vld [vmem:[%s2 + $0x38] sm:$0xff]
    %v147 = vld [vmem:[%s2 + $0x40] sm:$0xff]
    %v148 = vld [vmem:[%s2 + $0x48] sm:$0xff]
    %v149 = vld [vmem:[%s2 + $0x50] sm:$0xff]
    %v150 = vld [vmem:[%s2 + $0x58] sm:$0xff]
    %v151 = vld [vmem:[%s2 + $0x60] sm:$0xff]
    %v152 = vld [vmem:[%s2 + $0x68] sm:$0xff]
    %v153 = vld [vmem:[%s2 + $0x70] sm:$0xff]
    %v154 = vld [vmem:[%s2 + $0x78] sm:$0xff]
    %v155 = vld [vmem:[%s2 + $0x80] sm:$0xff]
    %v156 = vld [vmem:[%s2 + $0x88] sm:$0xff]
    %v157 = vld [vmem:[%s2 + $0x90] sm:$0xff]
    %v158 = vld [vmem:[%s2 + $0x98] sm:$0xff]
    %v159 = vld [vmem:[%s2 + $0xa0] sm:$0xff]
    %v160 = vld [vmem:[%s2 + $0xa8] sm:$0xff]
    %v161 = vld [vmem:[%s2 + $0xb0] sm:$0xff]
    %v162 = vld [vmem:[%s2 + $0xb8] sm:$0xff]
    %v163 = vld [vmem:[%s2 + $0xc0] sm:$0xff]
    %v164 = vld [vmem:[%s2 + $0xc8] sm:$0xff]
    %v165 = vld [vmem:[%s2 + $0xd0] sm:$0xff]
    %v166 = vld [vmem:[%s2 + $0xd8] sm:$0xff]
    %v167 = vld [vmem:[%s2 + $0xe0] sm:$0xff]
    %v168 = vld [vmem:[%s2 + $0xe8] sm:$0xff]
    %v169 = vld [vmem:[%s2 + $0xf0] sm:$0xff]
    %v170 = vld [vmem:[%s2 + $0xf8] sm:$0xff]
    %v171 = vld [vmem:[%s2 + $0x100] sm:$0xff]
    %v172 = vld [vmem:[%s2 + $0x108] sm:$0xff]
    %v173 = vld [vmem:[%s2 + $0x110] sm:$0xff]
    %v174 = vld [vmem:[%s2 + $0x118] sm:$0xff]
    %v175 = vld [vmem:[%s2 + $0x120] sm:$0xff]
    %v176 = vld [vmem:[%s2 + $0x128] sm:$0xff]
    %v177 = vld [vmem:[%s2 + $0x130] sm:$0xff]
    %v178 = vld [vmem:[%s2 + $0x138] sm:$0xff]
    %v179 = vld [vmem:[%s2 + $0x140] sm:$0xff]
    %v180 = vld [vmem:[%s2 + $0x148] sm:$0xff]
    %v181 = vld [vmem:[%s2 + $0x150] sm:$0xff]
    %v182 = vld [vmem:[%s2 + $0x158] sm:$0xff]
    %v183 = vld [vmem:[%s2 + $0x160] sm:$0xff]
    %v184 = vld [vmem:[%s2 + $0x168] sm:$0xff]
    %v185 = vld [vmem:[%s2 + $0x170] sm:$0xff]
    %v186 = vld [vmem:[%s2 + $0x178] sm:$0xff]
    %v187 = vld [vmem:[%s2 + $0x180] sm:$0xff]
    %v188 = vld [vmem:[%s2 + $0x188] sm:$0xff]
    %v189 = vld [vmem:[%s2 + $0x190] sm:$0xff]
    %v190 = vld [vmem:[%s2 + $0x198] sm:$0xff]
    %v191 = vld [vmem:[%s2 + $0x1a0] sm:$0xff]
    %v192 = vld [vmem:[%s2 + $0x1a8] sm:$0xff]
    %v193 = vld [vmem:[%s2 + $0x1b0] sm:$0xff]
    %v194 = vld [vmem:[%s2 + $0x1b8] sm:$0xff]
    %v195 = vld [vmem:[%s2 + $0x1c0] sm:$0xff]
    %v196 = vld [vmem:[%s2 + $0x1c8] sm:$0xff]
    %v197 = vld [vmem:[%s2 + $0x1d0] sm:$0xff]
    %v198 = vld [vmem:[%s2 + $0x1d8] sm:$0xff]
    %v199 = vld [vmem:[%s2 + $0x1e0] sm:$0xff]
    %v200 = vld [vmem:[%s2 + $0x1e8] sm:$0xff]
    %v201 = vld [vmem:[%s2 + $0x1f0] sm:$0xff]
    %v202 = vld [vmem:[%s2 + $0x1f8] sm:$0xff]
    %v203 = vld [vmem:[%s3] sm:$0xff]
    %v204 = vld [vmem:[%s3 + $0x8] sm:$0xff]
    %v205 = vld [vmem:[%s3 + $0x10] sm:$0xff]
    %v206 = vld [vmem:[%s3 + $0x18] sm:$0xff]
    %v207 = vld [vmem:[%s3 + $0x20] sm:$0xff]
    %v208 = vld [vmem:[%s3 + $0x28] sm:$0xff]
    %v209 = vld [vmem:[%s3 + $0x30] sm:$0xff]
    %v210 = vld [vmem:[%s3 + $0x38] sm:$0xff]
    %v211 = vld [vmem:[%s3 + $0x40] sm:$0xff]
    %v212 = vld [vmem:[%s3 + $0x48] sm:$0xff]
    %v213 = vld [vmem:[%s3 + $0x50] sm:$0xff]
    %v214 = vld [vmem:[%s3 + $0x58] sm:$0xff]
    %v215 = vld [vmem:[%s3 + $0x60] sm:$0xff]
    %v216 = vld [vmem:[%s3 + $0x68] sm:$0xff]
    %v217 = vld [vmem:[%s3 + $0x70] sm:$0xff]
    %v218 = vld [vmem:[%s3 + $0x78] sm:$0xff]
    %v219 = vld [vmem:[%s3 + $0x80] sm:$0xff]
    %v220 = vld [vmem:[%s3 + $0x88] sm:$0xff]
    %v221 = vld [vmem:[%s3 + $0x90] sm:$0xff]
    %v222 = vld [vmem:[%s3 + $0x98] sm:$0xff]
    %v223 = vld [vmem:[%s3 + $0xa0] sm:$0xff]
    %v224 = vld [vmem:[%s3 + $0xa8] sm:$0xff]
    %v225 = vld [vmem:[%s3 + $0xb0] sm:$0xff]
    %v226 = vld [vmem:[%s3 + $0xb8] sm:$0xff]
    %v227 = vld [vmem:[%s3 + $0xc0] sm:$0xff]
    %v228 = vld [vmem:[%s3 + $0xc8] sm:$0xff]
    %v229 = vld [vmem:[%s3 + $0xd0] sm:$0xff]
    %v230 = vld [vmem:[%s3 + $0xd8] sm:$0xff]
    %v231 = vld [vmem:[%s3 + $0xe0] sm:$0xff]
    %v232 = vld [vmem:[%s3 + $0xe8] sm:$0xff]
    %v233 = vld [vmem:[%s3 + $0xf0] sm:$0xff]
    %v234 = vld [vmem:[%s3 + $0xf8] sm:$0xff]
    %v235 = vld [vmem:[%s3 + $0x100] sm:$0xff]
    %v236 = vld [vmem:[%s3 + $0x108] sm:$0xff]
    %v237 = vld [vmem:[%s3 + $0x110] sm:$0xff]
    %v238 = vld [vmem:[%s3 + $0x118] sm:$0xff]
    %v239 = vld [vmem:[%s3 + $0x120] sm:$0xff]
    %v240 = vld [vmem:[%s3 + $0x128] sm:$0xff]
    %v241 = vld [vmem:[%s3 + $0x130] sm:$0xff]
    %v242 = vld [vmem:[%s3 + $0x138] sm:$0xff]
    %v243 = vld [vmem:[%s3 + $0x140] sm:$0xff]
    %v244 = vld [vmem:[%s3 + $0x148] sm:$0xff]
    %v245 = vld [vmem:[%s3 + $0x150] sm:$0xff]
    %v246 = vld [vmem:[%s3 + $0x158] sm:$0xff]
    %v247 = vld [vmem:[%s3 + $0x160] sm:$0xff]
    %v248 = vld [vmem:[%s3 + $0x168] sm:$0xff]
    %v249 = vld [vmem:[%s3 + $0x170] sm:$0xff]
    %v250 = vld [vmem:[%s3 + $0x178] sm:$0xff]
    %v251 = vld [vmem:[%s3 + $0x180] sm:$0xff]
    %v252 = vld [vmem:[%s3 + $0x188] sm:$0xff]
    %v253 = vld [vmem:[%s3 + $0x190] sm:$0xff]
    %v254 = vld [vmem:[%s3 + $0x198] sm:$0xff]
    %v255 = vld [vmem:[%s3 + $0x1a0] sm:$0xff]
    %v256 = vld [vmem:[%s3 + $0x1a8] sm:$0xff]
    %v257 = vld [vmem:[%s3 + $0x1b0] sm:$0xff]
    %v258 = vld [vmem:[%s3 + $0x1b8] sm:$0xff]
    %v259 = vld [vmem:[%s3 + $0x1c0] sm:$0xff]
    %v260 = vld [vmem:[%s3 + $0x1c8] sm:$0xff]
    %v261 = vld [vmem:[%s3 + $0x1d0] sm:$0xff]
    %v262 = vld [vmem:[%s3 + $0x1d8] sm:$0xff]
    %v263 = vld [vmem:[%s3 + $0x1e0] sm:$0xff]
    %v264 = vld [vmem:[%s3 + $0x1e8] sm:$0xff]
    %v265 = vld [vmem:[%s3 + $0x1f0] sm:$0xff]
    %v266 = vld [vmem:[%s3 + $0x1f8] sm:$0xff]
    %268 = vset.pattern.permute.xlu0 0
    %269 = vperm.xlu0 %268, %v203
    %v270 = vpop.permute.xlu0 %269
    %273 = vset.pattern.permute.xlu0 0
    %274 = vperm.xlu0 %273, %v204
    %v275 = vpop.permute.xlu0 %274
    %278 = vset.pattern.permute.xlu0 0
    %279 = vperm.xlu0 %278, %v205
    %v280 = vpop.permute.xlu0 %279
    %283 = vset.pattern.permute.xlu0 0
    %284 = vperm.xlu0 %283, %v206
    %v285 = vpop.permute.xlu0 %284
    %288 = vset.pattern.permute.xlu0 0
    %289 = vperm.xlu0 %288, %v207
    %v290 = vpop.permute.xlu0 %289
    %293 = vset.pattern.permute.xlu0 0
    %294 = vperm.xlu0 %293, %v208
    %v295 = vpop.permute.xlu0 %294
    %298 = vset.pattern.permute.xlu0 0
    %299 = vperm.xlu0 %298, %v209
    %v300 = vpop.permute.xlu0 %299
    %303 = vset.pattern.permute.xlu0 0
    %304 = vperm.xlu0 %303, %v210
    %v305 = vpop.permute.xlu0 %304
    %308 = vset.pattern.permute.xlu0 0
    %309 = vperm.xlu0 %308, %v211
    %v310 = vpop.permute.xlu0 %309
    %313 = vset.pattern.permute.xlu0 0
    %314 = vperm.xlu0 %313, %v212
    %v315 = vpop.permute.xlu0 %314
    %318 = vset.pattern.permute.xlu0 0
    %319 = vperm.xlu0 %318, %v213
    %v320 = vpop.permute.xlu0 %319
    %323 = vset.pattern.permute.xlu0 0
    %324 = vperm.xlu0 %323, %v214
    %v325 = vpop.permute.xlu0 %324
    %328 = vset.pattern.permute.xlu0 0
    %329 = vperm.xlu0 %328, %v215
    %v330 = vpop.permute.xlu0 %329
    %333 = vset.pattern.permute.xlu0 0
    %334 = vperm.xlu0 %333, %v216
    %v335 = vpop.permute.xlu0 %334
    %338 = vset.pattern.permute.xlu0 0
    %339 = vperm.xlu0 %338, %v217
    %v340 = vpop.permute.xlu0 %339
    %343 = vset.pattern.permute.xlu0 0
    %344 = vperm.xlu0 %343, %v218
    %v345 = vpop.permute.xlu0 %344
    %348 = vset.pattern.permute.xlu0 0
    %349 = vperm.xlu0 %348, %v219
    %v350 = vpop.permute.xlu0 %349
    %353 = vset.pattern.permute.xlu0 0
    %354 = vperm.xlu0 %353, %v220
    %v355 = vpop.permute.xlu0 %354
    %358 = vset.pattern.permute.xlu0 0
    %359 = vperm.xlu0 %358, %v221
    %v360 = vpop.permute.xlu0 %359
    %363 = vset.pattern.permute.xlu0 0
    %364 = vperm.xlu0 %363, %v222
    %v365 = vpop.permute.xlu0 %364
    %368 = vset.pattern.permute.xlu0 0
    %369 = vperm.xlu0 %368, %v223
    %v370 = vpop.permute.xlu0 %369
    %373 = vset.pattern.permute.xlu0 0
    %374 = vperm.xlu0 %373, %v224
    %v375 = vpop.permute.xlu0 %374
    %378 = vset.pattern.permute.xlu0 0
    %379 = vperm.xlu0 %378, %v225
    %v380 = vpop.permute.xlu0 %379
    %383 = vset.pattern.permute.xlu0 0
    %384 = vperm.xlu0 %383, %v226
    %v385 = vpop.permute.xlu0 %384
    %388 = vset.pattern.permute.xlu0 0
    %389 = vperm.xlu0 %388, %v227
    %v390 = vpop.permute.xlu0 %389
    %393 = vset.pattern.permute.xlu0 0
    %394 = vperm.xlu0 %393, %v228
    %v395 = vpop.permute.xlu0 %394
    %398 = vset.pattern.permute.xlu0 0
    %399 = vperm.xlu0 %398, %v229
    %v400 = vpop.permute.xlu0 %399
    %403 = vset.pattern.permute.xlu0 0
    %404 = vperm.xlu0 %403, %v230
    %v405 = vpop.permute.xlu0 %404
    %408 = vset.pattern.permute.xlu0 0
    %409 = vperm.xlu0 %408, %v231
    %v410 = vpop.permute.xlu0 %409
    %413 = vset.pattern.permute.xlu0 0
    %414 = vperm.xlu0 %413, %v232
    %v415 = vpop.permute.xlu0 %414
    %418 = vset.pattern.permute.xlu0 0
    %419 = vperm.xlu0 %418, %v233
    %v420 = vpop.permute.xlu0 %419
    %423 = vset.pattern.permute.xlu0 0
    %424 = vperm.xlu0 %423, %v234
    %v425 = vpop.permute.xlu0 %424
    %428 = vset.pattern.permute.xlu0 0
    %429 = vperm.xlu0 %428, %v235
    %v430 = vpop.permute.xlu0 %429
    %433 = vset.pattern.permute.xlu0 0
    %434 = vperm.xlu0 %433, %v236
    %v435 = vpop.permute.xlu0 %434
    %438 = vset.pattern.permute.xlu0 0
    %439 = vperm.xlu0 %438, %v237
    %v440 = vpop.permute.xlu0 %439
    %443 = vset.pattern.permute.xlu0 0
    %444 = vperm.xlu0 %443, %v238
    %v445 = vpop.permute.xlu0 %444
    %448 = vset.pattern.permute.xlu0 0
    %449 = vperm.xlu0 %448, %v239
    %v450 = vpop.permute.xlu0 %449
    %453 = vset.pattern.permute.xlu0 0
    %454 = vperm.xlu0 %453, %v240
    %v455 = vpop.permute.xlu0 %454
    %458 = vset.pattern.permute.xlu0 0
    %459 = vperm.xlu0 %458, %v241
    %v460 = vpop.permute.xlu0 %459
    %463 = vset.pattern.permute.xlu0 0
    %464 = vperm.xlu0 %463, %v242
    %v465 = vpop.permute.xlu0 %464
    %468 = vset.pattern.permute.xlu0 0
    %469 = vperm.xlu0 %468, %v243
    %v470 = vpop.permute.xlu0 %469
    %473 = vset.pattern.permute.xlu0 0
    %474 = vperm.xlu0 %473, %v244
    %v475 = vpop.permute.xlu0 %474
    %478 = vset.pattern.permute.xlu0 0
    %479 = vperm.xlu0 %478, %v245
    %v480 = vpop.permute.xlu0 %479
    %483 = vset.pattern.permute.xlu0 0
    %484 = vperm.xlu0 %483, %v246
    %v485 = vpop.permute.xlu0 %484
    %488 = vset.pattern.permute.xlu0 0
    %489 = vperm.xlu0 %488, %v247
    %v490 = vpop.permute.xlu0 %489
    %493 = vset.pattern.permute.xlu0 0
    %494 = vperm.xlu0 %493, %v248
    %v495 = vpop.permute.xlu0 %494
    %498 = vset.pattern.permute.xlu0 0
    %499 = vperm.xlu0 %498, %v249
    %v500 = vpop.permute.xlu0 %499
    %503 = vset.pattern.permute.xlu0 0
    %504 = vperm.xlu0 %503, %v250
    %v505 = vpop.permute.xlu0 %504
    %508 = vset.pattern.permute.xlu0 0
    %509 = vperm.xlu0 %508, %v251
    %v510 = vpop.permute.xlu0 %509
    %513 = vset.pattern.permute.xlu0 0
    %514 = vperm.xlu0 %513, %v252
    %v515 = vpop.permute.xlu0 %514
    %518 = vset.pattern.permute.xlu0 0
    %519 = vperm.xlu0 %518, %v253
    %v520 = vpop.permute.xlu0 %519
    %523 = vset.pattern.permute.xlu0 0
    %524 = vperm.xlu0 %523, %v254
    %v525 = vpop.permute.xlu0 %524
    %528 = vset.pattern.permute.xlu0 0
    %529 = vperm.xlu0 %528, %v255
    %v530 = vpop.permute.xlu0 %529
    %533 = vset.pattern.permute.xlu0 0
    %534 = vperm.xlu0 %533, %v256
    %v535 = vpop.permute.xlu0 %534
    %538 = vset.pattern.permute.xlu0 0
    %539 = vperm.xlu0 %538, %v257
    %v540 = vpop.permute.xlu0 %539
    %543 = vset.pattern.permute.xlu0 0
    %544 = vperm.xlu0 %543, %v258
    %v545 = vpop.permute.xlu0 %544
    %548 = vset.pattern.permute.xlu0 0
    %549 = vperm.xlu0 %548, %v259
    %v550 = vpop.permute.xlu0 %549
    %553 = vset.pattern.permute.xlu0 0
    %554 = vperm.xlu0 %553, %v260
    %v555 = vpop.permute.xlu0 %554
    %558 = vset.pattern.permute.xlu0 0
    %559 = vperm.xlu0 %558, %v261
    %v560 = vpop.permute.xlu0 %559
    %563 = vset.pattern.permute.xlu0 0
    %564 = vperm.xlu0 %563, %v262
    %v565 = vpop.permute.xlu0 %564
    %568 = vset.pattern.permute.xlu0 0
    %569 = vperm.xlu0 %568, %v263
    %v570 = vpop.permute.xlu0 %569
    %573 = vset.pattern.permute.xlu0 0
    %574 = vperm.xlu0 %573, %v264
    %v575 = vpop.permute.xlu0 %574
    %578 = vset.pattern.permute.xlu0 0
    %579 = vperm.xlu0 %578, %v265
    %v580 = vpop.permute.xlu0 %579
    %583 = vset.pattern.permute.xlu0 0
    %584 = vperm.xlu0 %583, %v266
    %v585 = vpop.permute.xlu0 %584
    %vm587 = vcmask 195584
    %v589 = vsel %vm587, %v139, 0
    %v592 = vsel %vm587, %v140, 0
    %v595 = vsel %vm587, %v141, 0
    %v598 = vsel %vm587, %v142, 0
    %v601 = vsel %vm587, %v143, 0
    %v604 = vsel %vm587, %v144, 0
    %v607 = vsel %vm587, %v145, 0
    %v610 = vsel %vm587, %v146, 0
    %v613 = vsel %vm587, %v147, 0
    %v616 = vsel %vm587, %v148, 0
    %v619 = vsel %vm587, %v149, 0
    %v622 = vsel %vm587, %v150, 0
    %v625 = vsel %vm587, %v151, 0
    %v628 = vsel %vm587, %v152, 0
    %v631 = vsel %vm587, %v153, 0
    %v634 = vsel %vm587, %v154, 0
    %v637 = vsel %vm587, %v155, 0
    %v640 = vsel %vm587, %v156, 0
    %v643 = vsel %vm587, %v157, 0
    %v646 = vsel %vm587, %v158, 0
    %v649 = vsel %vm587, %v159, 0
    %v652 = vsel %vm587, %v160, 0
    %v655 = vsel %vm587, %v161, 0
    %v658 = vsel %vm587, %v162, 0
    %v661 = vsel %vm587, %v163, 0
    %v664 = vsel %vm587, %v164, 0
    %v667 = vsel %vm587, %v165, 0
    %v670 = vsel %vm587, %v166, 0
    %v673 = vsel %vm587, %v167, 0
    %v676 = vsel %vm587, %v168, 0
    %v679 = vsel %vm587, %v169, 0
    %v682 = vsel %vm587, %v170, 0
    %v685 = vsel %vm587, %v171, 0
    %v688 = vsel %vm587, %v172, 0
    %v691 = vsel %vm587, %v173, 0
    %v694 = vsel %vm587, %v174, 0
    %v697 = vsel %vm587, %v175, 0
    %v700 = vsel %vm587, %v176, 0
    %v703 = vsel %vm587, %v177, 0
    %v706 = vsel %vm587, %v178, 0
    %v709 = vsel %vm587, %v179, 0
    %v712 = vsel %vm587, %v180, 0
    %v715 = vsel %vm587, %v181, 0
    %v718 = vsel %vm587, %v182, 0
    %v721 = vsel %vm587, %v183, 0
    %v724 = vsel %vm587, %v184, 0
    %v727 = vsel %vm587, %v185, 0
    %v730 = vsel %vm587, %v186, 0
    %v733 = vsel %vm587, %v187, 0
    %v736 = vsel %vm587, %v188, 0
    %v739 = vsel %vm587, %v189, 0
    %v742 = vsel %vm587, %v190, 0
    %v745 = vsel %vm587, %v191, 0
    %v748 = vsel %vm587, %v192, 0
    %v751 = vsel %vm587, %v193, 0
    %v754 = vsel %vm587, %v194, 0
    %v757 = vsel %vm587, %v195, 0
    %v760 = vsel %vm587, %v196, 0
    %v763 = vsel %vm587, %v197, 0
    %v766 = vsel %vm587, %v198, 0
    %v769 = vsel %vm587, %v199, 0
    %v772 = vsel %vm587, %v200, 0
    %v775 = vsel %vm587, %v201, 0
    %v778 = vsel %vm587, %v202, 0
    %780 = vmatprep.subr.mxu0 0.0
    %781 = vmatpush1.msra.mxu0 0.0
    %782 = vmatprep.subr.mxu0 0.0
    %783 = vmatpush1.msra.mxu0 0.0
    %784 = vmatprep.subr.mxu0 0.0
    %785 = vmatpush1.msra.mxu0 0.0
    %786 = vmatprep.subr.mxu0 0.0
    %787 = vmatpush1.msra.mxu0 0.0
    %788 = vmatprep.subr.mxu0 0.0
    %789 = vmatpush1.msra.mxu0 0.0
    %790 = vmatprep.subr.mxu0 0.0
    %791 = vmatpush1.msra.mxu0 0.0
    %792 = vmatprep.subr.mxu0 0.0
    %793 = vmatpush1.msra.mxu0 0.0
    %794 = vmatprep.subr.mxu0 0.0
    %795 = vmatpush1.msra.mxu0 0.0
    %796 = vmatprep.subr.mxu0 0.0
    %797 = vmatpush1.msra.mxu0 0.0
    %798 = vmatprep.subr.mxu0 0.0
    %799 = vmatpush1.msra.mxu0 0.0
    %800 = vmatprep.subr.mxu0 0.0
    %801 = vmatpush1.msra.mxu0 0.0
    %802 = vmatprep.subr.mxu0 0.0
    %803 = vmatpush1.msra.mxu0 0.0
    %804 = vmatprep.subr.mxu0 0.0
    %805 = vmatpush1.msra.mxu0 0.0
    %806 = vmatprep.subr.mxu0 0.0
    %807 = vmatpush1.msra.mxu0 %v136
    %808 = vmatprep.subr.mxu0 0.0
    %809 = vmatpush1.msra.mxu0 %v131
    %810 = vmatprep.subr.mxu0 0.0
    %811 = vmatpush1.msra.mxu0 %v126
    %812 = vmatprep.subr.mxu0 0.0
    %813 = vmatpush2.msra.mxu0 0.0
    %814 = vmatprep.subr.mxu0 0.0
    %815 = vmatpush2.msra.mxu0 0.0
    %816 = vmatprep.subr.mxu0 0.0
    %817 = vmatpush2.msra.mxu0 0.0
    %818 = vmatprep.subr.mxu0 0.0
    %819 = vmatpush2.msra.mxu0 0.0
    %820 = vmatprep.subr.mxu0 0.0
    %821 = vmatpush2.msra.mxu0 0.0
    %822 = vmatprep.subr.mxu0 0.0
    %823 = vmatpush2.msra.mxu0 0.0
    %824 = vmatprep.subr.mxu0 0.0
    %825 = vmatpush2.msra.mxu0 0.0
    %826 = vmatprep.subr.mxu0 0.0
    %827 = vmatpush2.msra.mxu0 0.0
    %828 = vmatprep.subr.mxu0 0.0
    %829 = vmatpush2.msra.mxu0 0.0
    %830 = vmatprep.subr.mxu0 0.0
    %831 = vmatpush2.msra.mxu0 0.0
    %832 = vmatprep.subr.mxu0 0.0
    %833 = vmatpush2.msra.mxu0 0.0
    %834 = vmatprep.subr.mxu0 0.0
    %835 = vmatpush2.msra.mxu0 0.0
    %836 = vmatprep.subr.mxu0 0.0
    %837 = vmatpush2.msra.mxu0 0.0
    %838 = vmatprep.subr.mxu0 0.0
    %839 = vmatpush2.msra.mxu0 0.0
    %840 = vmatprep.subr.mxu0 0.0
    %841 = vmatpush2.msra.mxu0 0.0
    %842 = vmatprep.subr.mxu0 0.0
    %843 = vmatpush2.msra.mxu0 0.0
    %844 = vmatprep.mubr.f32.mxu0 0.0
    %845 = vmatmul.mubr.f32.gmra.mxu0 %v589
    %v846 = vpop.f32.mrf.mxu0
    %v847 = vadd.f32 %v270, %v846
    %v848 = vpop.f32.mrf.mxu0
    %849 = vmatprep.mubr.f32.mxu0 0.0
    %850 = vmatmul.mubr.f32.gmra.mxu0 %v592
    %v851 = vpop.f32.mrf.mxu0
    %v852 = vadd.f32 %v275, %v851
    %v853 = vpop.f32.mrf.mxu0
    %854 = vmatprep.mubr.f32.mxu0 0.0
    %855 = vmatmul.mubr.f32.gmra.mxu0 %v595
    %v856 = vpop.f32.mrf.mxu0
    %v857 = vadd.f32 %v280, %v856
    %v858 = vpop.f32.mrf.mxu0
    %859 = vmatprep.mubr.f32.mxu0 0.0
    %860 = vmatmul.mubr.f32.gmra.mxu0 %v598
    %v861 = vpop.f32.mrf.mxu0
    %v862 = vadd.f32 %v285, %v861
    %v863 = vpop.f32.mrf.mxu0
    %864 = vmatprep.mubr.f32.mxu0 0.0
    %865 = vmatmul.mubr.f32.gmra.mxu0 %v601
    %v866 = vpop.f32.mrf.mxu0
    %v867 = vadd.f32 %v290, %v866
    %v868 = vpop.f32.mrf.mxu0
    %869 = vmatprep.mubr.f32.mxu0 0.0
    %870 = vmatmul.mubr.f32.gmra.mxu0 %v604
    %v871 = vpop.f32.mrf.mxu0
    %v872 = vadd.f32 %v295, %v871
    %v873 = vpop.f32.mrf.mxu0
    %874 = vmatprep.mubr.f32.mxu0 0.0
    %875 = vmatmul.mubr.f32.gmra.mxu0 %v607
    %v876 = vpop.f32.mrf.mxu0
    %v877 = vadd.f32 %v300, %v876
    %v878 = vpop.f32.mrf.mxu0
    %879 = vmatprep.mubr.f32.mxu0 0.0
    %880 = vmatmul.mubr.f32.gmra.mxu0 %v610
    %v881 = vpop.f32.mrf.mxu0
    %v882 = vadd.f32 %v305, %v881
    %v883 = vpop.f32.mrf.mxu0
    %884 = vmatprep.mubr.f32.mxu0 0.0
    %885 = vmatmul.mubr.f32.gmra.mxu0 %v613
    %v886 = vpop.f32.mrf.mxu0
    %v887 = vadd.f32 %v310, %v886
    %v888 = vpop.f32.mrf.mxu0
    %889 = vmatprep.mubr.f32.mxu0 0.0
    %890 = vmatmul.mubr.f32.gmra.mxu0 %v616
    %v891 = vpop.f32.mrf.mxu0
    %v892 = vadd.f32 %v315, %v891
    %v893 = vpop.f32.mrf.mxu0
    %894 = vmatprep.mubr.f32.mxu0 0.0
    %895 = vmatmul.mubr.f32.gmra.mxu0 %v619
    %v896 = vpop.f32.mrf.mxu0
    %v897 = vadd.f32 %v320, %v896
    %v898 = vpop.f32.mrf.mxu0
    %899 = vmatprep.mubr.f32.mxu0 0.0
    %900 = vmatmul.mubr.f32.gmra.mxu0 %v622
    %v901 = vpop.f32.mrf.mxu0
    %v902 = vadd.f32 %v325, %v901
    %v903 = vpop.f32.mrf.mxu0
    %904 = vmatprep.mubr.f32.mxu0 0.0
    %905 = vmatmul.mubr.f32.gmra.mxu0 %v625
    %v906 = vpop.f32.mrf.mxu0
    %v907 = vadd.f32 %v330, %v906
    %v908 = vpop.f32.mrf.mxu0
    %909 = vmatprep.mubr.f32.mxu0 0.0
    %910 = vmatmul.mubr.f32.gmra.mxu0 %v628
    %v911 = vpop.f32.mrf.mxu0
    %v912 = vadd.f32 %v335, %v911
    %v913 = vpop.f32.mrf.mxu0
    %914 = vmatprep.mubr.f32.mxu0 0.0
    %915 = vmatmul.mubr.f32.gmra.mxu0 %v631
    %v916 = vpop.f32.mrf.mxu0
    %v917 = vadd.f32 %v340, %v916
    %v918 = vpop.f32.mrf.mxu0
    %919 = vmatprep.mubr.f32.mxu0 0.0
    %920 = vmatmul.mubr.f32.gmra.mxu0 %v634
    %v921 = vpop.f32.mrf.mxu0
    %v922 = vadd.f32 %v345, %v921
    %v923 = vpop.f32.mrf.mxu0
    %924 = vmatprep.mubr.f32.mxu0 0.0
    %925 = vmatmul.mubr.f32.gmra.mxu0 %v637
    %v926 = vpop.f32.mrf.mxu0
    %v927 = vadd.f32 %v350, %v926
    %v928 = vpop.f32.mrf.mxu0
    %929 = vmatprep.mubr.f32.mxu0 0.0
    %930 = vmatmul.mubr.f32.gmra.mxu0 %v640
    %v931 = vpop.f32.mrf.mxu0
    %v932 = vadd.f32 %v355, %v931
    %v933 = vpop.f32.mrf.mxu0
    %934 = vmatprep.mubr.f32.mxu0 0.0
    %935 = vmatmul.mubr.f32.gmra.mxu0 %v643
    %v936 = vpop.f32.mrf.mxu0
    %v937 = vadd.f32 %v360, %v936
    %v938 = vpop.f32.mrf.mxu0
    %939 = vmatprep.mubr.f32.mxu0 0.0
    %940 = vmatmul.mubr.f32.gmra.mxu0 %v646
    %v941 = vpop.f32.mrf.mxu0
    %v942 = vadd.f32 %v365, %v941
    %v943 = vpop.f32.mrf.mxu0
    %944 = vmatprep.mubr.f32.mxu0 0.0
    %945 = vmatmul.mubr.f32.gmra.mxu0 %v649
    %v946 = vpop.f32.mrf.mxu0
    %v947 = vadd.f32 %v370, %v946
    %v948 = vpop.f32.mrf.mxu0
    %949 = vmatprep.mubr.f32.mxu0 0.0
    %950 = vmatmul.mubr.f32.gmra.mxu0 %v652
    %v951 = vpop.f32.mrf.mxu0
    %v952 = vadd.f32 %v375, %v951
    %v953 = vpop.f32.mrf.mxu0
    %954 = vmatprep.mubr.f32.mxu0 0.0
    %955 = vmatmul.mubr.f32.gmra.mxu0 %v655
    %v956 = vpop.f32.mrf.mxu0
    %v957 = vadd.f32 %v380, %v956
    %v958 = vpop.f32.mrf.mxu0
    %959 = vmatprep.mubr.f32.mxu0 0.0
    %960 = vmatmul.mubr.f32.gmra.mxu0 %v658
    %v961 = vpop.f32.mrf.mxu0
    %v962 = vadd.f32 %v385, %v961
    %v963 = vpop.f32.mrf.mxu0
    %964 = vmatprep.mubr.f32.mxu0 0.0
    %965 = vmatmul.mubr.f32.gmra.mxu0 %v661
    %v966 = vpop.f32.mrf.mxu0
    %v967 = vadd.f32 %v390, %v966
    %v968 = vpop.f32.mrf.mxu0
    %969 = vmatprep.mubr.f32.mxu0 0.0
    %970 = vmatmul.mubr.f32.gmra.mxu0 %v664
    %v971 = vpop.f32.mrf.mxu0
    %v972 = vadd.f32 %v395, %v971
    %v973 = vpop.f32.mrf.mxu0
    %974 = vmatprep.mubr.f32.mxu0 0.0
    %975 = vmatmul.mubr.f32.gmra.mxu0 %v667
    %v976 = vpop.f32.mrf.mxu0
    %v977 = vadd.f32 %v400, %v976
    %v978 = vpop.f32.mrf.mxu0
    %979 = vmatprep.mubr.f32.mxu0 0.0
    %980 = vmatmul.mubr.f32.gmra.mxu0 %v670
    %v981 = vpop.f32.mrf.mxu0
    %v982 = vadd.f32 %v405, %v981
    %v983 = vpop.f32.mrf.mxu0
    %984 = vmatprep.mubr.f32.mxu0 0.0
    %985 = vmatmul.mubr.f32.gmra.mxu0 %v673
    %v986 = vpop.f32.mrf.mxu0
    %v987 = vadd.f32 %v410, %v986
    %v988 = vpop.f32.mrf.mxu0
    %989 = vmatprep.mubr.f32.mxu0 0.0
    %990 = vmatmul.mubr.f32.gmra.mxu0 %v676
    %v991 = vpop.f32.mrf.mxu0
    %v992 = vadd.f32 %v415, %v991
    %v993 = vpop.f32.mrf.mxu0
    %994 = vmatprep.mubr.f32.mxu0 0.0
    %995 = vmatmul.mubr.f32.gmra.mxu0 %v679
    %v996 = vpop.f32.mrf.mxu0
    %v997 = vadd.f32 %v420, %v996
    %v998 = vpop.f32.mrf.mxu0
    %999 = vmatprep.mubr.f32.mxu0 0.0
    %1000 = vmatmul.mubr.f32.gmra.mxu0 %v682
    %v1001 = vpop.f32.mrf.mxu0
    %v1002 = vadd.f32 %v425, %v1001
    %v1003 = vpop.f32.mrf.mxu0
    %1004 = vmatprep.mubr.f32.mxu0 0.0
    %1005 = vmatmul.mubr.f32.gmra.mxu0 %v685
    %v1006 = vpop.f32.mrf.mxu0
    %v1007 = vadd.f32 %v430, %v1006
    %v1008 = vpop.f32.mrf.mxu0
    %1009 = vmatprep.mubr.f32.mxu0 0.0
    %1010 = vmatmul.mubr.f32.gmra.mxu0 %v688
    %v1011 = vpop.f32.mrf.mxu0
    %v1012 = vadd.f32 %v435, %v1011
    %v1013 = vpop.f32.mrf.mxu0
    %1014 = vmatprep.mubr.f32.mxu0 0.0
    %1015 = vmatmul.mubr.f32.gmra.mxu0 %v691
    %v1016 = vpop.f32.mrf.mxu0
    %v1017 = vadd.f32 %v440, %v1016
    %v1018 = vpop.f32.mrf.mxu0
    %1019 = vmatprep.mubr.f32.mxu0 0.0
    %1020 = vmatmul.mubr.f32.gmra.mxu0 %v694
    %v1021 = vpop.f32.mrf.mxu0
    %v1022 = vadd.f32 %v445, %v1021
    %v1023 = vpop.f32.mrf.mxu0
    %1024 = vmatprep.mubr.f32.mxu0 0.0
    %1025 = vmatmul.mubr.f32.gmra.mxu0 %v697
    %v1026 = vpop.f32.mrf.mxu0
    %v1027 = vadd.f32 %v450, %v1026
    %v1028 = vpop.f32.mrf.mxu0
    %1029 = vmatprep.mubr.f32.mxu0 0.0
    %1030 = vmatmul.mubr.f32.gmra.mxu0 %v700
    %v1031 = vpop.f32.mrf.mxu0
    %v1032 = vadd.f32 %v455, %v1031
    %v1033 = vpop.f32.mrf.mxu0
    %1034 = vmatprep.mubr.f32.mxu0 0.0
    %1035 = vmatmul.mubr.f32.gmra.mxu0 %v703
    %v1036 = vpop.f32.mrf.mxu0
    %v1037 = vadd.f32 %v460, %v1036
    %v1038 = vpop.f32.mrf.mxu0
    %1039 = vmatprep.mubr.f32.mxu0 0.0
    %1040 = vmatmul.mubr.f32.gmra.mxu0 %v706
    %v1041 = vpop.f32.mrf.mxu0
    %v1042 = vadd.f32 %v465, %v1041
    %v1043 = vpop.f32.mrf.mxu0
    %1044 = vmatprep.mubr.f32.mxu0 0.0
    %1045 = vmatmul.mubr.f32.gmra.mxu0 %v709
    %v1046 = vpop.f32.mrf.mxu0
    %v1047 = vadd.f32 %v470, %v1046
    %v1048 = vpop.f32.mrf.mxu0
    %1049 = vmatprep.mubr.f32.mxu0 0.0
    %1050 = vmatmul.mubr.f32.gmra.mxu0 %v712
    %v1051 = vpop.f32.mrf.mxu0
    %v1052 = vadd.f32 %v475, %v1051
    %v1053 = vpop.f32.mrf.mxu0
    %1054 = vmatprep.mubr.f32.mxu0 0.0
    %1055 = vmatmul.mubr.f32.gmra.mxu0 %v715
    %v1056 = vpop.f32.mrf.mxu0
    %v1057 = vadd.f32 %v480, %v1056
    %v1058 = vpop.f32.mrf.mxu0
    %1059 = vmatprep.mubr.f32.mxu0 0.0
    %1060 = vmatmul.mubr.f32.gmra.mxu0 %v718
    %v1061 = vpop.f32.mrf.mxu0
    %v1062 = vadd.f32 %v485, %v1061
    %v1063 = vpop.f32.mrf.mxu0
    %1064 = vmatprep.mubr.f32.mxu0 0.0
    %1065 = vmatmul.mubr.f32.gmra.mxu0 %v721
    %v1066 = vpop.f32.mrf.mxu0
    %v1067 = vadd.f32 %v490, %v1066
    %v1068 = vpop.f32.mrf.mxu0
    %1069 = vmatprep.mubr.f32.mxu0 0.0
    %1070 = vmatmul.mubr.f32.gmra.mxu0 %v724
    %v1071 = vpop.f32.mrf.mxu0
    %v1072 = vadd.f32 %v495, %v1071
    %v1073 = vpop.f32.mrf.mxu0
    %1074 = vmatprep.mubr.f32.mxu0 0.0
    %1075 = vmatmul.mubr.f32.gmra.mxu0 %v727
    %v1076 = vpop.f32.mrf.mxu0
    %v1077 = vadd.f32 %v500, %v1076
    %v1078 = vpop.f32.mrf.mxu0
    %1079 = vmatprep.mubr.f32.mxu0 0.0
    %1080 = vmatmul.mubr.f32.gmra.mxu0 %v730
    %v1081 = vpop.f32.mrf.mxu0
    %v1082 = vadd.f32 %v505, %v1081
    %v1083 = vpop.f32.mrf.mxu0
    %1084 = vmatprep.mubr.f32.mxu0 0.0
    %1085 = vmatmul.mubr.f32.gmra.mxu0 %v733
    %v1086 = vpop.f32.mrf.mxu0
    %v1087 = vadd.f32 %v510, %v1086
    %v1088 = vpop.f32.mrf.mxu0
    %1089 = vmatprep.mubr.f32.mxu0 0.0
    %1090 = vmatmul.mubr.f32.gmra.mxu0 %v736
    %v1091 = vpop.f32.mrf.mxu0
    %v1092 = vadd.f32 %v515, %v1091
    %v1093 = vpop.f32.mrf.mxu0
    %1094 = vmatprep.mubr.f32.mxu0 0.0
    %1095 = vmatmul.mubr.f32.gmra.mxu0 %v739
    %v1096 = vpop.f32.mrf.mxu0
    %v1097 = vadd.f32 %v520, %v1096
    %v1098 = vpop.f32.mrf.mxu0
    %1099 = vmatprep.mubr.f32.mxu0 0.0
    %1100 = vmatmul.mubr.f32.gmra.mxu0 %v742
    %v1101 = vpop.f32.mrf.mxu0
    %v1102 = vadd.f32 %v525, %v1101
    %v1103 = vpop.f32.mrf.mxu0
    %1104 = vmatprep.mubr.f32.mxu0 0.0
    %1105 = vmatmul.mubr.f32.gmra.mxu0 %v745
    %v1106 = vpop.f32.mrf.mxu0
    %v1107 = vadd.f32 %v530, %v1106
    %v1108 = vpop.f32.mrf.mxu0
    %1109 = vmatprep.mubr.f32.mxu0 0.0
    %1110 = vmatmul.mubr.f32.gmra.mxu0 %v748
    %v1111 = vpop.f32.mrf.mxu0
    %v1112 = vadd.f32 %v535, %v1111
    %v1113 = vpop.f32.mrf.mxu0
    %1114 = vmatprep.mubr.f32.mxu0 0.0
    %1115 = vmatmul.mubr.f32.gmra.mxu0 %v751
    %v1116 = vpop.f32.mrf.mxu0
    %v1117 = vadd.f32 %v540, %v1116
    %v1118 = vpop.f32.mrf.mxu0
    %1119 = vmatprep.mubr.f32.mxu0 0.0
    %1120 = vmatmul.mubr.f32.gmra.mxu0 %v754
    %v1121 = vpop.f32.mrf.mxu0
    %v1122 = vadd.f32 %v545, %v1121
    %v1123 = vpop.f32.mrf.mxu0
    %1124 = vmatprep.mubr.f32.mxu0 0.0
    %1125 = vmatmul.mubr.f32.gmra.mxu0 %v757
    %v1126 = vpop.f32.mrf.mxu0
    %v1127 = vadd.f32 %v550, %v1126
    %v1128 = vpop.f32.mrf.mxu0
    %1129 = vmatprep.mubr.f32.mxu0 0.0
    %1130 = vmatmul.mubr.f32.gmra.mxu0 %v760
    %v1131 = vpop.f32.mrf.mxu0
    %v1132 = vadd.f32 %v555, %v1131
    %v1133 = vpop.f32.mrf.mxu0
    %1134 = vmatprep.mubr.f32.mxu0 0.0
    %1135 = vmatmul.mubr.f32.gmra.mxu0 %v763
    %v1136 = vpop.f32.mrf.mxu0
    %v1137 = vadd.f32 %v560, %v1136
    %v1138 = vpop.f32.mrf.mxu0
    %1139 = vmatprep.mubr.f32.mxu0 0.0
    %1140 = vmatmul.mubr.f32.gmra.mxu0 %v766
    %v1141 = vpop.f32.mrf.mxu0
    %v1142 = vadd.f32 %v565, %v1141
    %v1143 = vpop.f32.mrf.mxu0
    %1144 = vmatprep.mubr.f32.mxu0 0.0
    %1145 = vmatmul.mubr.f32.gmra.mxu0 %v769
    %v1146 = vpop.f32.mrf.mxu0
    %v1147 = vadd.f32 %v570, %v1146
    %v1148 = vpop.f32.mrf.mxu0
    %1149 = vmatprep.mubr.f32.mxu0 0.0
    %1150 = vmatmul.mubr.f32.gmra.mxu0 %v772
    %v1151 = vpop.f32.mrf.mxu0
    %v1152 = vadd.f32 %v575, %v1151
    %v1153 = vpop.f32.mrf.mxu0
    %1154 = vmatprep.mubr.f32.mxu0 0.0
    %1155 = vmatmul.mubr.f32.gmra.mxu0 %v775
    %v1156 = vpop.f32.mrf.mxu0
    %v1157 = vadd.f32 %v580, %v1156
    %v1158 = vpop.f32.mrf.mxu0
    %1159 = vmatprep.mubr.f32.mxu0 0.0
    %1160 = vmatmul.mubr.f32.gmra.mxu0 %v778
    %v1161 = vpop.f32.mrf.mxu0
    %v1162 = vadd.f32 %v585, %v1161
    %v1163 = vpop.f32.mrf.mxu0
    %1164 = vdwg.mxu0
    %v1165 = vmax.f32 %v847, 0.0
    %v1166 = vmax.f32 %v852, 0.0
    %v1167 = vmax.f32 %v857, 0.0
    %v1168 = vmax.f32 %v862, 0.0
    %v1169 = vmax.f32 %v867, 0.0
    %v1170 = vmax.f32 %v872, 0.0
    %v1171 = vmax.f32 %v877, 0.0
    %v1172 = vmax.f32 %v882, 0.0
    %v1173 = vmax.f32 %v887, 0.0
    %v1174 = vmax.f32 %v892, 0.0
    %v1175 = vmax.f32 %v897, 0.0
    %v1176 = vmax.f32 %v902, 0.0
    %v1177 = vmax.f32 %v907, 0.0
    %v1178 = vmax.f32 %v912, 0.0
    %v1179 = vmax.f32 %v917, 0.0
    %v1180 = vmax.f32 %v922, 0.0
    %v1181 = vmax.f32 %v927, 0.0
    %v1182 = vmax.f32 %v932, 0.0
    %v1183 = vmax.f32 %v937, 0.0
    %v1184 = vmax.f32 %v942, 0.0
    %v1185 = vmax.f32 %v947, 0.0
    %v1186 = vmax.f32 %v952, 0.0
    %v1187 = vmax.f32 %v957, 0.0
    %v1188 = vmax.f32 %v962, 0.0
    %v1189 = vmax.f32 %v967, 0.0
    %v1190 = vmax.f32 %v972, 0.0
    %v1191 = vmax.f32 %v977, 0.0
    %v1192 = vmax.f32 %v982, 0.0
    %v1193 = vmax.f32 %v987, 0.0
    %v1194 = vmax.f32 %v992, 0.0
    %v1195 = vmax.f32 %v997, 0.0
    %v1196 = vmax.f32 %v1002, 0.0
    %v1197 = vmax.f32 %v1007, 0.0
    %v1198 = vmax.f32 %v1012, 0.0
    %v1199 = vmax.f32 %v1017, 0.0
    %v1200 = vmax.f32 %v1022, 0.0
    %v1201 = vmax.f32 %v1027, 0.0
    %v1202 = vmax.f32 %v1032, 0.0
    %v1203 = vmax.f32 %v1037, 0.0
    %v1204 = vmax.f32 %v1042, 0.0
    %v1205 = vmax.f32 %v1047, 0.0
    %v1206 = vmax.f32 %v1052, 0.0
    %v1207 = vmax.f32 %v1057, 0.0
    %v1208 = vmax.f32 %v1062, 0.0
    %v1209 = vmax.f32 %v1067, 0.0
    %v1210 = vmax.f32 %v1072, 0.0
    %v1211 = vmax.f32 %v1077, 0.0
    %v1212 = vmax.f32 %v1082, 0.0
    %v1213 = vmax.f32 %v1087, 0.0
    %v1214 = vmax.f32 %v1092, 0.0
    %v1215 = vmax.f32 %v1097, 0.0
    %v1216 = vmax.f32 %v1102, 0.0
    %v1217 = vmax.f32 %v1107, 0.0
    %v1218 = vmax.f32 %v1112, 0.0
    %v1219 = vmax.f32 %v1117, 0.0
    %v1220 = vmax.f32 %v1122, 0.0
    %v1221 = vmax.f32 %v1127, 0.0
    %v1222 = vmax.f32 %v1132, 0.0
    %v1223 = vmax.f32 %v1137, 0.0
    %v1224 = vmax.f32 %v1142, 0.0
    %v1225 = vmax.f32 %v1147, 0.0
    %v1226 = vmax.f32 %v1152, 0.0
    %v1227 = vmax.f32 %v1157, 0.0
    %v1228 = vmax.f32 %v1162, 0.0
    %v1229 = vld [vmem:[%s4] sm:$0xff]
    %v1230 = vld [vmem:[%s4 + $0x8] sm:$0xff]
    %v1231 = vld [vmem:[%s4 + $0x10] sm:$0xff]
    %v1232 = vld [vmem:[%s4 + $0x18] sm:$0xff]
    %v1233 = vld [vmem:[%s4 + $0x20] sm:$0xff]
    %v1234 = vld [vmem:[%s4 + $0x28] sm:$0xff]
    %v1235 = vld [vmem:[%s4 + $0x30] sm:$0xff]
    %v1236 = vld [vmem:[%s4 + $0x38] sm:$0xff]
    %v1237 = vld [vmem:[%s4 + $0x40] sm:$0xff]
    %v1238 = vld [vmem:[%s4 + $0x48] sm:$0xff]
    %v1239 = vld [vmem:[%s4 + $0x50] sm:$0xff]
    %v1240 = vld [vmem:[%s4 + $0x58] sm:$0xff]
    %v1241 = vld [vmem:[%s4 + $0x60] sm:$0xff]
    %v1242 = vld [vmem:[%s4 + $0x68] sm:$0xff]
    %v1243 = vld [vmem:[%s4 + $0x70] sm:$0xff]
    %v1244 = vld [vmem:[%s4 + $0x78] sm:$0xff]
    %vm1245 = vcmask 523264
    %v1247 = vsel %vm1245, %v1165, 0
    %v1250 = vsel %vm1245, %v1166, 0
    %v1253 = vsel %vm1245, %v1167, 0
    %v1256 = vsel %vm1245, %v1168, 0
    %v1259 = vsel %vm1245, %v1169, 0
    %v1262 = vsel %vm1245, %v1170, 0
    %v1265 = vsel %vm1245, %v1171, 0
    %v1268 = vsel %vm1245, %v1172, 0
    %v1271 = vsel %vm1245, %v1173, 0
    %v1274 = vsel %vm1245, %v1174, 0
    %v1277 = vsel %vm1245, %v1175, 0
    %v1280 = vsel %vm1245, %v1176, 0
    %v1283 = vsel %vm1245, %v1177, 0
    %v1286 = vsel %vm1245, %v1178, 0
    %v1289 = vsel %vm1245, %v1179, 0
    %v1292 = vsel %vm1245, %v1180, 0
    %v1295 = vsel %vm1245, %v1181, 0
    %v1298 = vsel %vm1245, %v1182, 0
    %v1301 = vsel %vm1245, %v1183, 0
    %v1304 = vsel %vm1245, %v1184, 0
    %v1307 = vsel %vm1245, %v1185, 0
    %v1310 = vsel %vm1245, %v1186, 0
    %v1313 = vsel %vm1245, %v1187, 0
    %v1316 = vsel %vm1245, %v1188, 0
    %v1319 = vsel %vm1245, %v1189, 0
    %v1322 = vsel %vm1245, %v1190, 0
    %v1325 = vsel %vm1245, %v1191, 0
    %v1328 = vsel %vm1245, %v1192, 0
    %v1331 = vsel %vm1245, %v1193, 0
    %v1334 = vsel %vm1245, %v1194, 0
    %v1337 = vsel %vm1245, %v1195, 0
    %v1340 = vsel %vm1245, %v1196, 0
    %v1343 = vsel %vm1245, %v1197, 0
    %v1346 = vsel %vm1245, %v1198, 0
    %v1349 = vsel %vm1245, %v1199, 0
    %v1352 = vsel %vm1245, %v1200, 0
    %v1355 = vsel %vm1245, %v1201, 0
    %v1358 = vsel %vm1245, %v1202, 0
    %v1361 = vsel %vm1245, %v1203, 0
    %v1364 = vsel %vm1245, %v1204, 0
    %v1367 = vsel %vm1245, %v1205, 0
    %v1370 = vsel %vm1245, %v1206, 0
    %v1373 = vsel %vm1245, %v1207, 0
    %v1376 = vsel %vm1245, %v1208, 0
    %v1379 = vsel %vm1245, %v1209, 0
    %v1382 = vsel %vm1245, %v1210, 0
    %v1385 = vsel %vm1245, %v1211, 0
    %v1388 = vsel %vm1245, %v1212, 0
    %v1391 = vsel %vm1245, %v1213, 0
    %v1394 = vsel %vm1245, %v1214, 0
    %v1397 = vsel %vm1245, %v1215, 0
    %v1400 = vsel %vm1245, %v1216, 0
    %v1403 = vsel %vm1245, %v1217, 0
    %v1406 = vsel %vm1245, %v1218, 0
    %v1409 = vsel %vm1245, %v1219, 0
    %v1412 = vsel %vm1245, %v1220, 0
    %v1415 = vsel %vm1245, %v1221, 0
    %v1418 = vsel %vm1245, %v1222, 0
    %v1421 = vsel %vm1245, %v1223, 0
    %v1424 = vsel %vm1245, %v1224, 0
    %v1427 = vsel %vm1245, %v1225, 0
    %v1430 = vsel %vm1245, %v1226, 0
    %v1433 = vsel %vm1245, %v1227, 0
    %v1436 = vsel %vm1245, %v1228, 0
    %1438 = vmatprep.subr.mxu0 0.0
    %1439 = vmatpush1.msra.mxu0 0.0
    %1440 = vmatprep.subr.mxu0 0.0
    %1441 = vmatpush1.msra.mxu0 0.0
    %1442 = vmatprep.subr.mxu0 0.0
    %1443 = vmatpush1.msra.mxu0 0.0
    %1444 = vmatprep.subr.mxu0 0.0
    %1445 = vmatpush1.msra.mxu0 0.0
    %1446 = vmatprep.subr.mxu0 0.0
    %1447 = vmatpush1.msra.mxu0 0.0
    %1448 = vmatprep.subr.mxu0 0.0
    %1449 = vmatpush1.msra.mxu0 0.0
    %1450 = vmatprep.subr.mxu0 0.0
    %1451 = vmatpush1.msra.mxu0 0.0
    %1452 = vmatprep.subr.mxu0 0.0
    %1453 = vmatpush1.msra.mxu0 0.0
    %1454 = vmatprep.subr.mxu0 %v1244
    %1455 = vmatpush1.msra.mxu0 %v1243
    %1456 = vmatprep.subr.mxu0 %v1242
    %1457 = vmatpush1.msra.mxu0 %v1241
    %1458 = vmatprep.subr.mxu0 %v1240
    %1459 = vmatpush1.msra.mxu0 %v1239
    %1460 = vmatprep.subr.mxu0 %v1238
    %1461 = vmatpush1.msra.mxu0 %v1237
    %1462 = vmatprep.subr.mxu0 %v1236
    %1463 = vmatpush1.msra.mxu0 %v1235
    %1464 = vmatprep.subr.mxu0 %v1234
    %1465 = vmatpush1.msra.mxu0 %v1233
    %1466 = vmatprep.subr.mxu0 %v1232
    %1467 = vmatpush1.msra.mxu0 %v1231
    %1468 = vmatprep.subr.mxu0 %v1230
    %1469 = vmatpush1.msra.mxu0 %v1229
    %1470 = vmatprep.subr.mxu0 0.0
    %1471 = vmatpush2.msra.mxu0 0.0
    %1472 = vmatprep.subr.mxu0 0.0
    %1473 = vmatpush2.msra.mxu0 0.0
    %1474 = vmatprep.subr.mxu0 0.0
    %1475 = vmatpush2.msra.mxu0 0.0
    %1476 = vmatprep.subr.mxu0 0.0
    %1477 = vmatpush2.msra.mxu0 0.0
    %1478 = vmatprep.subr.mxu0 0.0
    %1479 = vmatpush2.msra.mxu0 0.0
    %1480 = vmatprep.subr.mxu0 0.0
    %1481 = vmatpush2.msra.mxu0 0.0
    %1482 = vmatprep.subr.mxu0 0.0
    %1483 = vmatpush2.msra.mxu0 0.0
    %1484 = vmatprep.subr.mxu0 0.0
    %1485 = vmatpush2.msra.mxu0 0.0
    %1486 = vmatprep.subr.mxu0 0.0
    %1487 = vmatpush2.msra.mxu0 0.0
    %1488 = vmatprep.subr.mxu0 0.0
    %1489 = vmatpush2.msra.mxu0 0.0
    %1490 = vmatprep.subr.mxu0 0.0
    %1491 = vmatpush2.msra.mxu0 0.0
    %1492 = vmatprep.subr.mxu0 0.0
    %1493 = vmatpush2.msra.mxu0 0.0
    %1494 = vmatprep.subr.mxu0 0.0
    %1495 = vmatpush2.msra.mxu0 0.0
    %1496 = vmatprep.subr.mxu0 0.0
    %1497 = vmatpush2.msra.mxu0 0.0
    %1498 = vmatprep.subr.mxu0 0.0
    %1499 = vmatpush2.msra.mxu0 0.0
    %1500 = vmatprep.subr.mxu0 0.0
    %1501 = vmatpush2.msra.mxu0 0.0
    %1502 = vmatprep.mubr.f32.mxu0 0.0
    %1503 = vmatmul.mubr.f32.gmra.mxu0 %v1247
    %v1504 = vpop.f32.mrf.mxu0
    %v1505 = vadd.f32 0.0, %v1504
    %v1506 = vpop.f32.mrf.mxu0
    %v1507 = vadd.f32 0.0, %v1506
    %1508 = vmatprep.mubr.f32.mxu0 0.0
    %1509 = vmatmul.mubr.f32.gmra.mxu0 %v1250
    %v1510 = vpop.f32.mrf.mxu0
    %v1511 = vadd.f32 0.0, %v1510
    %v1512 = vpop.f32.mrf.mxu0
    %v1513 = vadd.f32 0.0, %v1512
    %1514 = vmatprep.mubr.f32.mxu0 0.0
    %1515 = vmatmul.mubr.f32.gmra.mxu0 %v1253
    %v1516 = vpop.f32.mrf.mxu0
    %v1517 = vadd.f32 0.0, %v1516
    %v1518 = vpop.f32.mrf.mxu0
    %v1519 = vadd.f32 0.0, %v1518
    %1520 = vmatprep.mubr.f32.mxu0 0.0
    %1521 = vmatmul.mubr.f32.gmra.mxu0 %v1256
    %v1522 = vpop.f32.mrf.mxu0
    %v1523 = vadd.f32 0.0, %v1522
    %v1524 = vpop.f32.mrf.mxu0
    %v1525 = vadd.f32 0.0, %v1524
    %1526 = vmatprep.mubr.f32.mxu0 0.0
    %1527 = vmatmul.mubr.f32.gmra.mxu0 %v1259
    %v1528 = vpop.f32.mrf.mxu0
    %v1529 = vadd.f32 0.0, %v1528
    %v1530 = vpop.f32.mrf.mxu0
    %v1531 = vadd.f32 0.0, %v1530
    %1532 = vmatprep.mubr.f32.mxu0 0.0
    %1533 = vmatmul.mubr.f32.gmra.mxu0 %v1262
    %v1534 = vpop.f32.mrf.mxu0
    %v1535 = vadd.f32 0.0, %v1534
    %v1536 = vpop.f32.mrf.mxu0
    %v1537 = vadd.f32 0.0, %v1536
    %1538 = vmatprep.mubr.f32.mxu0 0.0
    %1539 = vmatmul.mubr.f32.gmra.mxu0 %v1265
    %v1540 = vpop.f32.mrf.mxu0
    %v1541 = vadd.f32 0.0, %v1540
    %v1542 = vpop.f32.mrf.mxu0
    %v1543 = vadd.f32 0.0, %v1542
    %1544 = vmatprep.mubr.f32.mxu0 0.0
    %1545 = vmatmul.mubr.f32.gmra.mxu0 %v1268
    %v1546 = vpop.f32.mrf.mxu0
    %v1547 = vadd.f32 0.0, %v1546
    %v1548 = vpop.f32.mrf.mxu0
    %v1549 = vadd.f32 0.0, %v1548
    %1550 = vmatprep.mubr.f32.mxu0 0.0
    %1551 = vmatmul.mubr.f32.gmra.mxu0 %v1271
    %v1552 = vpop.f32.mrf.mxu0
    %v1553 = vadd.f32 0.0, %v1552
    %v1554 = vpop.f32.mrf.mxu0
    %v1555 = vadd.f32 0.0, %v1554
    %1556 = vmatprep.mubr.f32.mxu0 0.0
    %1557 = vmatmul.mubr.f32.gmra.mxu0 %v1274
    %v1558 = vpop.f32.mrf.mxu0
    %v1559 = vadd.f32 0.0, %v1558
    %v1560 = vpop.f32.mrf.mxu0
    %v1561 = vadd.f32 0.0, %v1560
    %1562 = vmatprep.mubr.f32.mxu0 0.0
    %1563 = vmatmul.mubr.f32.gmra.mxu0 %v1277
    %v1564 = vpop.f32.mrf.mxu0
    %v1565 = vadd.f32 0.0, %v1564
    %v1566 = vpop.f32.mrf.mxu0
    %v1567 = vadd.f32 0.0, %v1566
    %1568 = vmatprep.mubr.f32.mxu0 0.0
    %1569 = vmatmul.mubr.f32.gmra.mxu0 %v1280
    %v1570 = vpop.f32.mrf.mxu0
    %v1571 = vadd.f32 0.0, %v1570
    %v1572 = vpop.f32.mrf.mxu0
    %v1573 = vadd.f32 0.0, %v1572
    %1574 = vmatprep.mubr.f32.mxu0 0.0
    %1575 = vmatmul.mubr.f32.gmra.mxu0 %v1283
    %v1576 = vpop.f32.mrf.mxu0
    %v1577 = vadd.f32 0.0, %v1576
    %v1578 = vpop.f32.mrf.mxu0
    %v1579 = vadd.f32 0.0, %v1578
    %1580 = vmatprep.mubr.f32.mxu0 0.0
    %1581 = vmatmul.mubr.f32.gmra.mxu0 %v1286
    %v1582 = vpop.f32.mrf.mxu0
    %v1583 = vadd.f32 0.0, %v1582
    %v1584 = vpop.f32.mrf.mxu0
    %v1585 = vadd.f32 0.0, %v1584
    %1586 = vmatprep.mubr.f32.mxu0 0.0
    %1587 = vmatmul.mubr.f32.gmra.mxu0 %v1289
    %v1588 = vpop.f32.mrf.mxu0
    %v1589 = vadd.f32 0.0, %v1588
    %v1590 = vpop.f32.mrf.mxu0
    %v1591 = vadd.f32 0.0, %v1590
    %1592 = vmatprep.mubr.f32.mxu0 0.0
    %1593 = vmatmul.mubr.f32.gmra.mxu0 %v1292
    %v1594 = vpop.f32.mrf.mxu0
    %v1595 = vadd.f32 0.0, %v1594
    %v1596 = vpop.f32.mrf.mxu0
    %v1597 = vadd.f32 0.0, %v1596
    %1598 = vmatprep.mubr.f32.mxu0 0.0
    %1599 = vmatmul.mubr.f32.gmra.mxu0 %v1295
    %v1600 = vpop.f32.mrf.mxu0
    %v1601 = vadd.f32 0.0, %v1600
    %v1602 = vpop.f32.mrf.mxu0
    %v1603 = vadd.f32 0.0, %v1602
    %1604 = vmatprep.mubr.f32.mxu0 0.0
    %1605 = vmatmul.mubr.f32.gmra.mxu0 %v1298
    %v1606 = vpop.f32.mrf.mxu0
    %v1607 = vadd.f32 0.0, %v1606
    %v1608 = vpop.f32.mrf.mxu0
    %v1609 = vadd.f32 0.0, %v1608
    %1610 = vmatprep.mubr.f32.mxu0 0.0
    %1611 = vmatmul.mubr.f32.gmra.mxu0 %v1301
    %v1612 = vpop.f32.mrf.mxu0
    %v1613 = vadd.f32 0.0, %v1612
    %v1614 = vpop.f32.mrf.mxu0
    %v1615 = vadd.f32 0.0, %v1614
    %1616 = vmatprep.mubr.f32.mxu0 0.0
    %1617 = vmatmul.mubr.f32.gmra.mxu0 %v1304
    %v1618 = vpop.f32.mrf.mxu0
    %v1619 = vadd.f32 0.0, %v1618
    %v1620 = vpop.f32.mrf.mxu0
    %v1621 = vadd.f32 0.0, %v1620
    %1622 = vmatprep.mubr.f32.mxu0 0.0
    %1623 = vmatmul.mubr.f32.gmra.mxu0 %v1307
    %v1624 = vpop.f32.mrf.mxu0
    %v1625 = vadd.f32 0.0, %v1624
    %v1626 = vpop.f32.mrf.mxu0
    %v1627 = vadd.f32 0.0, %v1626
    %1628 = vmatprep.mubr.f32.mxu0 0.0
    %1629 = vmatmul.mubr.f32.gmra.mxu0 %v1310
    %v1630 = vpop.f32.mrf.mxu0
    %v1631 = vadd.f32 0.0, %v1630
    %v1632 = vpop.f32.mrf.mxu0
    %v1633 = vadd.f32 0.0, %v1632
    %1634 = vmatprep.mubr.f32.mxu0 0.0
    %1635 = vmatmul.mubr.f32.gmra.mxu0 %v1313
    %v1636 = vpop.f32.mrf.mxu0
    %v1637 = vadd.f32 0.0, %v1636
    %v1638 = vpop.f32.mrf.mxu0
    %v1639 = vadd.f32 0.0, %v1638
    %1640 = vmatprep.mubr.f32.mxu0 0.0
    %1641 = vmatmul.mubr.f32.gmra.mxu0 %v1316
    %v1642 = vpop.f32.mrf.mxu0
    %v1643 = vadd.f32 0.0, %v1642
    %v1644 = vpop.f32.mrf.mxu0
    %v1645 = vadd.f32 0.0, %v1644
    %1646 = vmatprep.mubr.f32.mxu0 0.0
    %1647 = vmatmul.mubr.f32.gmra.mxu0 %v1319
    %v1648 = vpop.f32.mrf.mxu0
    %v1649 = vadd.f32 0.0, %v1648
    %v1650 = vpop.f32.mrf.mxu0
    %v1651 = vadd.f32 0.0, %v1650
    %1652 = vmatprep.mubr.f32.mxu0 0.0
    %1653 = vmatmul.mubr.f32.gmra.mxu0 %v1322
    %v1654 = vpop.f32.mrf.mxu0
    %v1655 = vadd.f32 0.0, %v1654
    %v1656 = vpop.f32.mrf.mxu0
    %v1657 = vadd.f32 0.0, %v1656
    %1658 = vmatprep.mubr.f32.mxu0 0.0
    %1659 = vmatmul.mubr.f32.gmra.mxu0 %v1325
    %v1660 = vpop.f32.mrf.mxu0
    %v1661 = vadd.f32 0.0, %v1660
    %v1662 = vpop.f32.mrf.mxu0
    %v1663 = vadd.f32 0.0, %v1662
    %1664 = vmatprep.mubr.f32.mxu0 0.0
    %1665 = vmatmul.mubr.f32.gmra.mxu0 %v1328
    %v1666 = vpop.f32.mrf.mxu0
    %v1667 = vadd.f32 0.0, %v1666
    %v1668 = vpop.f32.mrf.mxu0
    %v1669 = vadd.f32 0.0, %v1668
    %1670 = vmatprep.mubr.f32.mxu0 0.0
    %1671 = vmatmul.mubr.f32.gmra.mxu0 %v1331
    %v1672 = vpop.f32.mrf.mxu0
    %v1673 = vadd.f32 0.0, %v1672
    %v1674 = vpop.f32.mrf.mxu0
    %v1675 = vadd.f32 0.0, %v1674
    %1676 = vmatprep.mubr.f32.mxu0 0.0
    %1677 = vmatmul.mubr.f32.gmra.mxu0 %v1334
    %v1678 = vpop.f32.mrf.mxu0
    %v1679 = vadd.f32 0.0, %v1678
    %v1680 = vpop.f32.mrf.mxu0
    %v1681 = vadd.f32 0.0, %v1680
    %1682 = vmatprep.mubr.f32.mxu0 0.0
    %1683 = vmatmul.mubr.f32.gmra.mxu0 %v1337
    %v1684 = vpop.f32.mrf.mxu0
    %v1685 = vadd.f32 0.0, %v1684
    %v1686 = vpop.f32.mrf.mxu0
    %v1687 = vadd.f32 0.0, %v1686
    %1688 = vmatprep.mubr.f32.mxu0 0.0
    %1689 = vmatmul.mubr.f32.gmra.mxu0 %v1340
    %v1690 = vpop.f32.mrf.mxu0
    %v1691 = vadd.f32 0.0, %v1690
    %v1692 = vpop.f32.mrf.mxu0
    %v1693 = vadd.f32 0.0, %v1692
    %1694 = vmatprep.mubr.f32.mxu0 0.0
    %1695 = vmatmul.mubr.f32.gmra.mxu0 %v1343
    %v1696 = vpop.f32.mrf.mxu0
    %v1697 = vadd.f32 0.0, %v1696
    %v1698 = vpop.f32.mrf.mxu0
    %v1699 = vadd.f32 0.0, %v1698
    %1700 = vmatprep.mubr.f32.mxu0 0.0
    %1701 = vmatmul.mubr.f32.gmra.mxu0 %v1346
    %v1702 = vpop.f32.mrf.mxu0
    %v1703 = vadd.f32 0.0, %v1702
    %v1704 = vpop.f32.mrf.mxu0
    %v1705 = vadd.f32 0.0, %v1704
    %1706 = vmatprep.mubr.f32.mxu0 0.0
    %1707 = vmatmul.mubr.f32.gmra.mxu0 %v1349
    %v1708 = vpop.f32.mrf.mxu0
    %v1709 = vadd.f32 0.0, %v1708
    %v1710 = vpop.f32.mrf.mxu0
    %v1711 = vadd.f32 0.0, %v1710
    %1712 = vmatprep.mubr.f32.mxu0 0.0
    %1713 = vmatmul.mubr.f32.gmra.mxu0 %v1352
    %v1714 = vpop.f32.mrf.mxu0
    %v1715 = vadd.f32 0.0, %v1714
    %v1716 = vpop.f32.mrf.mxu0
    %v1717 = vadd.f32 0.0, %v1716
    %1718 = vmatprep.mubr.f32.mxu0 0.0
    %1719 = vmatmul.mubr.f32.gmra.mxu0 %v1355
    %v1720 = vpop.f32.mrf.mxu0
    %v1721 = vadd.f32 0.0, %v1720
    %v1722 = vpop.f32.mrf.mxu0
    %v1723 = vadd.f32 0.0, %v1722
    %1724 = vmatprep.mubr.f32.mxu0 0.0
    %1725 = vmatmul.mubr.f32.gmra.mxu0 %v1358
    %v1726 = vpop.f32.mrf.mxu0
    %v1727 = vadd.f32 0.0, %v1726
    %v1728 = vpop.f32.mrf.mxu0
    %v1729 = vadd.f32 0.0, %v1728
    %1730 = vmatprep.mubr.f32.mxu0 0.0
    %1731 = vmatmul.mubr.f32.gmra.mxu0 %v1361
    %v1732 = vpop.f32.mrf.mxu0
    %v1733 = vadd.f32 0.0, %v1732
    %v1734 = vpop.f32.mrf.mxu0
    %v1735 = vadd.f32 0.0, %v1734
    %1736 = vmatprep.mubr.f32.mxu0 0.0
    %1737 = vmatmul.mubr.f32.gmra.mxu0 %v1364
    %v1738 = vpop.f32.mrf.mxu0
    %v1739 = vadd.f32 0.0, %v1738
    %v1740 = vpop.f32.mrf.mxu0
    %v1741 = vadd.f32 0.0, %v1740
    %1742 = vmatprep.mubr.f32.mxu0 0.0
    %1743 = vmatmul.mubr.f32.gmra.mxu0 %v1367
    %v1744 = vpop.f32.mrf.mxu0
    %v1745 = vadd.f32 0.0, %v1744
    %v1746 = vpop.f32.mrf.mxu0
    %v1747 = vadd.f32 0.0, %v1746
    %1748 = vmatprep.mubr.f32.mxu0 0.0
    %1749 = vmatmul.mubr.f32.gmra.mxu0 %v1370
    %v1750 = vpop.f32.mrf.mxu0
    %v1751 = vadd.f32 0.0, %v1750
    %v1752 = vpop.f32.mrf.mxu0
    %v1753 = vadd.f32 0.0, %v1752
    %1754 = vmatprep.mubr.f32.mxu0 0.0
    %1755 = vmatmul.mubr.f32.gmra.mxu0 %v1373
    %v1756 = vpop.f32.mrf.mxu0
    %v1757 = vadd.f32 0.0, %v1756
    %v1758 = vpop.f32.mrf.mxu0
    %v1759 = vadd.f32 0.0, %v1758
    %1760 = vmatprep.mubr.f32.mxu0 0.0
    %1761 = vmatmul.mubr.f32.gmra.mxu0 %v1376
    %v1762 = vpop.f32.mrf.mxu0
    %v1763 = vadd.f32 0.0, %v1762
    %v1764 = vpop.f32.mrf.mxu0
    %v1765 = vadd.f32 0.0, %v1764
    %1766 = vmatprep.mubr.f32.mxu0 0.0
    %1767 = vmatmul.mubr.f32.gmra.mxu0 %v1379
    %v1768 = vpop.f32.mrf.mxu0
    %v1769 = vadd.f32 0.0, %v1768
    %v1770 = vpop.f32.mrf.mxu0
    %v1771 = vadd.f32 0.0, %v1770
    %1772 = vmatprep.mubr.f32.mxu0 0.0
    %1773 = vmatmul.mubr.f32.gmra.mxu0 %v1382
    %v1774 = vpop.f32.mrf.mxu0
    %v1775 = vadd.f32 0.0, %v1774
    %v1776 = vpop.f32.mrf.mxu0
    %v1777 = vadd.f32 0.0, %v1776
    %1778 = vmatprep.mubr.f32.mxu0 0.0
    %1779 = vmatmul.mubr.f32.gmra.mxu0 %v1385
    %v1780 = vpop.f32.mrf.mxu0
    %v1781 = vadd.f32 0.0, %v1780
    %v1782 = vpop.f32.mrf.mxu0
    %v1783 = vadd.f32 0.0, %v1782
    %1784 = vmatprep.mubr.f32.mxu0 0.0
    %1785 = vmatmul.mubr.f32.gmra.mxu0 %v1388
    %v1786 = vpop.f32.mrf.mxu0
    %v1787 = vadd.f32 0.0, %v1786
    %v1788 = vpop.f32.mrf.mxu0
    %v1789 = vadd.f32 0.0, %v1788
    %1790 = vmatprep.mubr.f32.mxu0 0.0
    %1791 = vmatmul.mubr.f32.gmra.mxu0 %v1391
    %v1792 = vpop.f32.mrf.mxu0
    %v1793 = vadd.f32 0.0, %v1792
    %v1794 = vpop.f32.mrf.mxu0
    %v1795 = vadd.f32 0.0, %v1794
    %1796 = vmatprep.mubr.f32.mxu0 0.0
    %1797 = vmatmul.mubr.f32.gmra.mxu0 %v1394
    %v1798 = vpop.f32.mrf.mxu0
    %v1799 = vadd.f32 0.0, %v1798
    %v1800 = vpop.f32.mrf.mxu0
    %v1801 = vadd.f32 0.0, %v1800
    %1802 = vmatprep.mubr.f32.mxu0 0.0
    %1803 = vmatmul.mubr.f32.gmra.mxu0 %v1397
    %v1804 = vpop.f32.mrf.mxu0
    %v1805 = vadd.f32 0.0, %v1804
    %v1806 = vpop.f32.mrf.mxu0
    %v1807 = vadd.f32 0.0, %v1806
    %1808 = vmatprep.mubr.f32.mxu0 0.0
    %1809 = vmatmul.mubr.f32.gmra.mxu0 %v1400
    %v1810 = vpop.f32.mrf.mxu0
    %v1811 = vadd.f32 0.0, %v1810
    %v1812 = vpop.f32.mrf.mxu0
    %v1813 = vadd.f32 0.0, %v1812
    %1814 = vmatprep.mubr.f32.mxu0 0.0
    %1815 = vmatmul.mubr.f32.gmra.mxu0 %v1403
    %v1816 = vpop.f32.mrf.mxu0
    %v1817 = vadd.f32 0.0, %v1816
    %v1818 = vpop.f32.mrf.mxu0
    %v1819 = vadd.f32 0.0, %v1818
    %1820 = vmatprep.mubr.f32.mxu0 0.0
    %1821 = vmatmul.mubr.f32.gmra.mxu0 %v1406
    %v1822 = vpop.f32.mrf.mxu0
    %v1823 = vadd.f32 0.0, %v1822
    %v1824 = vpop.f32.mrf.mxu0
    %v1825 = vadd.f32 0.0, %v1824
    %1826 = vmatprep.mubr.f32.mxu0 0.0
    %1827 = vmatmul.mubr.f32.gmra.mxu0 %v1409
    %v1828 = vpop.f32.mrf.mxu0
    %v1829 = vadd.f32 0.0, %v1828
    %v1830 = vpop.f32.mrf.mxu0
    %v1831 = vadd.f32 0.0, %v1830
    %1832 = vmatprep.mubr.f32.mxu0 0.0
    %1833 = vmatmul.mubr.f32.gmra.mxu0 %v1412
    %v1834 = vpop.f32.mrf.mxu0
    %v1835 = vadd.f32 0.0, %v1834
    %v1836 = vpop.f32.mrf.mxu0
    %v1837 = vadd.f32 0.0, %v1836
    %1838 = vmatprep.mubr.f32.mxu0 0.0
    %1839 = vmatmul.mubr.f32.gmra.mxu0 %v1415
    %v1840 = vpop.f32.mrf.mxu0
    %v1841 = vadd.f32 0.0, %v1840
    %v1842 = vpop.f32.mrf.mxu0
    %v1843 = vadd.f32 0.0, %v1842
    %1844 = vmatprep.mubr.f32.mxu0 0.0
    %1845 = vmatmul.mubr.f32.gmra.mxu0 %v1418
    %v1846 = vpop.f32.mrf.mxu0
    %v1847 = vadd.f32 0.0, %v1846
    %v1848 = vpop.f32.mrf.mxu0
    %v1849 = vadd.f32 0.0, %v1848
    %1850 = vmatprep.mubr.f32.mxu0 0.0
    %1851 = vmatmul.mubr.f32.gmra.mxu0 %v1421
    %v1852 = vpop.f32.mrf.mxu0
    %v1853 = vadd.f32 0.0, %v1852
    %v1854 = vpop.f32.mrf.mxu0
    %v1855 = vadd.f32 0.0, %v1854
    %1856 = vmatprep.mubr.f32.mxu0 0.0
    %1857 = vmatmul.mubr.f32.gmra.mxu0 %v1424
    %v1858 = vpop.f32.mrf.mxu0
    %v1859 = vadd.f32 0.0, %v1858
    %v1860 = vpop.f32.mrf.mxu0
    %v1861 = vadd.f32 0.0, %v1860
    %1862 = vmatprep.mubr.f32.mxu0 0.0
    %1863 = vmatmul.mubr.f32.gmra.mxu0 %v1427
    %v1864 = vpop.f32.mrf.mxu0
    %v1865 = vadd.f32 0.0, %v1864
    %v1866 = vpop.f32.mrf.mxu0
    %v1867 = vadd.f32 0.0, %v1866
    %1868 = vmatprep.mubr.f32.mxu0 0.0
    %1869 = vmatmul.mubr.f32.gmra.mxu0 %v1430
    %v1870 = vpop.f32.mrf.mxu0
    %v1871 = vadd.f32 0.0, %v1870
    %v1872 = vpop.f32.mrf.mxu0
    %v1873 = vadd.f32 0.0, %v1872
    %1874 = vmatprep.mubr.f32.mxu0 0.0
    %1875 = vmatmul.mubr.f32.gmra.mxu0 %v1433
    %v1876 = vpop.f32.mrf.mxu0
    %v1877 = vadd.f32 0.0, %v1876
    %v1878 = vpop.f32.mrf.mxu0
    %v1879 = vadd.f32 0.0, %v1878
    %1880 = vmatprep.mubr.f32.mxu0 0.0
    %1881 = vmatmul.mubr.f32.gmra.mxu0 %v1436
    %v1882 = vpop.f32.mrf.mxu0
    %v1883 = vadd.f32 0.0, %v1882
    %v1884 = vpop.f32.mrf.mxu0
    %v1885 = vadd.f32 0.0, %v1884
    %1886 = vdwg.mxu0
    %1887 = vst [vmem:[#allocation2] sm:$0xff] %v1505
    %1888 = vst [vmem:[#allocation2 + $0x8] sm:$0xff] %v1507
    %1889 = vst [vmem:[#allocation2 + $0x40] sm:$0xff] %v1511
    %1890 = vst [vmem:[#allocation2 + $0x48] sm:$0xff] %v1513
    %1891 = vst [vmem:[#allocation2 + $0x80] sm:$0xff] %v1517
    %1892 = vst [vmem:[#allocation2 + $0x88] sm:$0xff] %v1519
    %1893 = vst [vmem:[#allocation2 + $0xc0] sm:$0xff] %v1523
    %1894 = vst [vmem:[#allocation2 + $0xc8] sm:$0xff] %v1525
    %1895 = vst [vmem:[#allocation2 + $0x100] sm:$0xff] %v1529
    %1896 = vst [vmem:[#allocation2 + $0x108] sm:$0xff] %v1531
    %1897 = vst [vmem:[#allocation2 + $0x140] sm:$0xff] %v1535
    %1898 = vst [vmem:[#allocation2 + $0x148] sm:$0xff] %v1537
    %1899 = vst [vmem:[#allocation2 + $0x180] sm:$0xff] %v1541
    %1900 = vst [vmem:[#allocation2 + $0x188] sm:$0xff] %v1543
    %1901 = vst [vmem:[#allocation2 + $0x1c0] sm:$0xff] %v1547
    %1902 = vst [vmem:[#allocation2 + $0x1c8] sm:$0xff] %v1549
    %1903 = vst [vmem:[#allocation2 + $0x10] sm:$0xff] %v1553
    %1904 = vst [vmem:[#allocation2 + $0x18] sm:$0xff] %v1555
    %1905 = vst [vmem:[#allocation2 + $0x50] sm:$0xff] %v1559
    %1906 = vst [vmem:[#allocation2 + $0x58] sm:$0xff] %v1561
    %1907 = vst [vmem:[#allocation2 + $0x90] sm:$0xff] %v1565
    %1908 = vst [vmem:[#allocation2 + $0x98] sm:$0xff] %v1567
    %1909 = vst [vmem:[#allocation2 + $0xd0] sm:$0xff] %v1571
    %1910 = vst [vmem:[#allocation2 + $0xd8] sm:$0xff] %v1573
    %1911 = vst [vmem:[#allocation2 + $0x110] sm:$0xff] %v1577
    %1912 = vst [vmem:[#allocation2 + $0x118] sm:$0xff] %v1579
    %1913 = vst [vmem:[#allocation2 + $0x150] sm:$0xff] %v1583
    %1914 = vst [vmem:[#allocation2 + $0x158] sm:$0xff] %v1585
    %1915 = vst [vmem:[#allocation2 + $0x190] sm:$0xff] %v1589
    %1916 = vst [vmem:[#allocation2 + $0x198] sm:$0xff] %v1591
    %1917 = vst [vmem:[#allocation2 + $0x1d0] sm:$0xff] %v1595
    %1918 = vst [vmem:[#allocation2 + $0x1d8] sm:$0xff] %v1597
    %1919 = vst [vmem:[#allocation2 + $0x20] sm:$0xff] %v1601
    %1920 = vst [vmem:[#allocation2 + $0x28] sm:$0xff] %v1603
    %1921 = vst [vmem:[#allocation2 + $0x60] sm:$0xff] %v1607
    %1922 = vst [vmem:[#allocation2 + $0x68] sm:$0xff] %v1609
    %1923 = vst [vmem:[#allocation2 + $0xa0] sm:$0xff] %v1613
    %1924 = vst [vmem:[#allocation2 + $0xa8] sm:$0xff] %v1615
    %1925 = vst [vmem:[#allocation2 + $0xe0] sm:$0xff] %v1619
    %1926 = vst [vmem:[#allocation2 + $0xe8] sm:$0xff] %v1621
    %1927 = vst [vmem:[#allocation2 + $0x120] sm:$0xff] %v1625
    %1928 = vst [vmem:[#allocation2 + $0x128] sm:$0xff] %v1627
    %1929 = vst [vmem:[#allocation2 + $0x160] sm:$0xff] %v1631
    %1930 = vst [vmem:[#allocation2 + $0x168] sm:$0xff] %v1633
    %1931 = vst [vmem:[#allocation2 + $0x1a0] sm:$0xff] %v1637
    %1932 = vst [vmem:[#allocation2 + $0x1a8] sm:$0xff] %v1639
    %1933 = vst [vmem:[#allocation2 + $0x1e0] sm:$0xff] %v1643
    %1934 = vst [vmem:[#allocation2 + $0x1e8] sm:$0xff] %v1645
    %1935 = vst [vmem:[#allocation2 + $0x30] sm:$0xff] %v1649
    %1936 = vst [vmem:[#allocation2 + $0x38] sm:$0xff] %v1651
    %1937 = vst [vmem:[#allocation2 + $0x70] sm:$0xff] %v1655
    %1938 = vst [vmem:[#allocation2 + $0x78] sm:$0xff] %v1657
    %1939 = vst [vmem:[#allocation2 + $0xb0] sm:$0xff] %v1661
    %1940 = vst [vmem:[#allocation2 + $0xb8] sm:$0xff] %v1663
    %1941 = vst [vmem:[#allocation2 + $0xf0] sm:$0xff] %v1667
    %1942 = vst [vmem:[#allocation2 + $0xf8] sm:$0xff] %v1669
    %1943 = vst [vmem:[#allocation2 + $0x130] sm:$0xff] %v1673
    %1944 = vst [vmem:[#allocation2 + $0x138] sm:$0xff] %v1675
    %1945 = vst [vmem:[#allocation2 + $0x170] sm:$0xff] %v1679
    %1946 = vst [vmem:[#allocation2 + $0x178] sm:$0xff] %v1681
    %1947 = vst [vmem:[#allocation2 + $0x1b0] sm:$0xff] %v1685
    %1948 = vst [vmem:[#allocation2 + $0x1b8] sm:$0xff] %v1687
    %1949 = vst [vmem:[#allocation2 + $0x1f0] sm:$0xff] %v1691
    %1950 = vst [vmem:[#allocation2 + $0x1f8] sm:$0xff] %v1693
    %s1951 = scalar_lea.vmem [#allocation2], 512
    %1952 = vst [vmem:[%s1951] sm:$0xff] %v1697
    %1953 = vst [vmem:[%s1951 + $0x8] sm:$0xff] %v1699
    %1954 = vst [vmem:[%s1951 + $0x40] sm:$0xff] %v1703
    %1955 = vst [vmem:[%s1951 + $0x48] sm:$0xff] %v1705
    %1956 = vst [vmem:[%s1951 + $0x80] sm:$0xff] %v1709
    %1957 = vst [vmem:[%s1951 + $0x88] sm:$0xff] %v1711
    %1958 = vst [vmem:[%s1951 + $0xc0] sm:$0xff] %v1715
    %1959 = vst [vmem:[%s1951 + $0xc8] sm:$0xff] %v1717
    %1960 = vst [vmem:[%s1951 + $0x100] sm:$0xff] %v1721
    %1961 = vst [vmem:[%s1951 + $0x108] sm:$0xff] %v1723
    %1962 = vst [vmem:[%s1951 + $0x140] sm:$0xff] %v1727
    %1963 = vst [vmem:[%s1951 + $0x148] sm:$0xff] %v1729
    %1964 = vst [vmem:[%s1951 + $0x180] sm:$0xff] %v1733
    %1965 = vst [vmem:[%s1951 + $0x188] sm:$0xff] %v1735
    %1966 = vst [vmem:[%s1951 + $0x1c0] sm:$0xff] %v1739
    %1967 = vst [vmem:[%s1951 + $0x1c8] sm:$0xff] %v1741
    %1968 = vst [vmem:[%s1951 + $0x10] sm:$0xff] %v1745
    %1969 = vst [vmem:[%s1951 + $0x18] sm:$0xff] %v1747
    %1970 = vst [vmem:[%s1951 + $0x50] sm:$0xff] %v1751
    %1971 = vst [vmem:[%s1951 + $0x58] sm:$0xff] %v1753
    %1972 = vst [vmem:[%s1951 + $0x90] sm:$0xff] %v1757
    %1973 = vst [vmem:[%s1951 + $0x98] sm:$0xff] %v1759
    %1974 = vst [vmem:[%s1951 + $0xd0] sm:$0xff] %v1763
    %1975 = vst [vmem:[%s1951 + $0xd8] sm:$0xff] %v1765
    %1976 = vst [vmem:[%s1951 + $0x110] sm:$0xff] %v1769
    %1977 = vst [vmem:[%s1951 + $0x118] sm:$0xff] %v1771
    %1978 = vst [vmem:[%s1951 + $0x150] sm:$0xff] %v1775
    %1979 = vst [vmem:[%s1951 + $0x158] sm:$0xff] %v1777
    %1980 = vst [vmem:[%s1951 + $0x190] sm:$0xff] %v1781
    %1981 = vst [vmem:[%s1951 + $0x198] sm:$0xff] %v1783
    %1982 = vst [vmem:[%s1951 + $0x1d0] sm:$0xff] %v1787
    %1983 = vst [vmem:[%s1951 + $0x1d8] sm:$0xff] %v1789
    %1984 = vst [vmem:[%s1951 + $0x20] sm:$0xff] %v1793
    %1985 = vst [vmem:[%s1951 + $0x28] sm:$0xff] %v1795
    %1986 = vst [vmem:[%s1951 + $0x60] sm:$0xff] %v1799
    %1987 = vst [vmem:[%s1951 + $0x68] sm:$0xff] %v1801
    %1988 = vst [vmem:[%s1951 + $0xa0] sm:$0xff] %v1805
    %1989 = vst [vmem:[%s1951 + $0xa8] sm:$0xff] %v1807
    %1990 = vst [vmem:[%s1951 + $0xe0] sm:$0xff] %v1811
    %1991 = vst [vmem:[%s1951 + $0xe8] sm:$0xff] %v1813
    %1992 = vst [vmem:[%s1951 + $0x120] sm:$0xff] %v1817
    %1993 = vst [vmem:[%s1951 + $0x128] sm:$0xff] %v1819
    %1994 = vst [vmem:[%s1951 + $0x160] sm:$0xff] %v1823
    %1995 = vst [vmem:[%s1951 + $0x168] sm:$0xff] %v1825
    %1996 = vst [vmem:[%s1951 + $0x1a0] sm:$0xff] %v1829
    %1997 = vst [vmem:[%s1951 + $0x1a8] sm:$0xff] %v1831
    %1998 = vst [vmem:[%s1951 + $0x1e0] sm:$0xff] %v1835
    %1999 = vst [vmem:[%s1951 + $0x1e8] sm:$0xff] %v1837
    %2000 = vst [vmem:[%s1951 + $0x30] sm:$0xff] %v1841
    %2001 = vst [vmem:[%s1951 + $0x38] sm:$0xff] %v1843
    %2002 = vst [vmem:[%s1951 + $0x70] sm:$0xff] %v1847
    %2003 = vst [vmem:[%s1951 + $0x78] sm:$0xff] %v1849
    %2004 = vst [vmem:[%s1951 + $0xb0] sm:$0xff] %v1853
    %2005 = vst [vmem:[%s1951 + $0xb8] sm:$0xff] %v1855
    %2006 = vst [vmem:[%s1951 + $0xf0] sm:$0xff] %v1859
    %2007 = vst [vmem:[%s1951 + $0xf8] sm:$0xff] %v1861
    %2008 = vst [vmem:[%s1951 + $0x130] sm:$0xff] %v1865
    %2009 = vst [vmem:[%s1951 + $0x138] sm:$0xff] %v1867
    %2010 = vst [vmem:[%s1951 + $0x170] sm:$0xff] %v1871
    %2011 = vst [vmem:[%s1951 + $0x178] sm:$0xff] %v1873
    %2012 = vst [vmem:[%s1951 + $0x1b0] sm:$0xff] %v1877
    %2013 = vst [vmem:[%s1951 + $0x1b8] sm:$0xff] %v1879
    %2014 = vst [vmem:[%s1951 + $0x1f0] sm:$0xff] %v1883
    %2015 = vst [vmem:[%s1951 + $0x1f8] sm:$0xff] %v1885
    // Predicated region
    $region22: #{tpu_custom_call.1} parent=1 // pred_check
      _
    $region23: #{tpu_custom_call.1} parent=1 // pred_check_branch
      %2017 = sbr.rel (0) target = $region25
    $region24: #{tpu_custom_call.1} parent=1 // pred_region
      %s2019 = ssub.s32 16384, 16384
      %2020 = vsyncadd [#allocation3], %s2019
      %s2021 = sshll.u32 [#allocation2], 4
      %s2022 = int_to_ptr.vmem [resolvable:$true] %s2021
      %2027 = dma.vmem_to_hbm [thread:$0]  %s2022, 16384, %s5, [#allocation3], 1024, 1024, 64
    $region25: #{tpu_custom_call.1} parent=1 // pred_fallthru
      _
    // Predicated region
    $region26: #{tpu_custom_call.1} parent=1 // pred_check
      _
    $region27: #{tpu_custom_call.1} parent=1 // pred_check_branch
      %2029 = sbr.rel (0) target = $region29
    $region28: #{tpu_custom_call.1} parent=1 // pred_region
      %2030 = dma.done [#allocation3], 16384
    $region29: #{tpu_custom_call.1} parent=1 // pred_fallthru
      _
    %2031 = vsyncpa [#allocation3], 1

</llo_original>
